<compile_context>
chip_gen: v6e
topology: v6e:2x2x1
jax: 0.10.0
libtpu: 0.0.40
codegen_flags: <defaults>
</compile_context>

<pallas_src>
import functools

import jax
import jax.numpy as jnp
from jax.experimental import pallas as pl
from jax.experimental.pallas import tpu as pltpu


# ---------------------------------------------------------------------------
# Fused dense-block kernel: one grid step = n_blk batch images.
# ---------------------------------------------------------------------------
def _db_kernel(x_ref, m_ref, *rest, W, n_dense, C_in, C_in_p, G_p):
    # x_ref : (1, C_in, L)      input, channels on sublanes, packed spatial on lanes
    # m_ref : (9, 1, L)         f32 boundary masks, one row per 3x3 tap
    # rest  : w_0, b_0, ..., w_{n-1}, b_{n-1},          dense 3x3 (packed)
    #         w1_x, w1_0, ..., w1_{n-1}, b1,            1x1 split per channel group
    #         o_ref,                                    (1, C_in, L) output
    #         slab_ref                                  (9*(C_in_p+(n-1)*G_p), L) scratch
    slab_ref = rest[-1]
    o_ref = rest[-2]
    b1_ref = rest[-3]
    w1_refs = rest[2 * n_dense: 3 * n_dense + 1]

    L = x_ref.shape[-1]
    f32 = jnp.float32

    # Per-tap boundary masks (zero out-of-image / cross-image lanes), loaded once.
    mask_rows = [m_ref[t] for t in range(9)]               # each (1, L) f32

    def write_taps(z, base, cp):
        """Write the 9 'same'-padded 3x3 taps of z (cp, L) into slab rows
        [base, base + 9*cp) in tap-major, channel-minor order (8-aligned)."""
        for dy in range(3):
            for dx in range(3):
                t = dy * 3 + dx
                s = (dy - 1) * W + (dx - 1)                 # tap i reads z[i + s]
                tap = z if s == 0 else pltpu.roll(z, shift=(-s) % L, axis=1)
                if not (dy == 1 and dx == 1):               # center tap needs no mask
                    tap = tap * mask_rows[t]
                slab_ref[base + t * cp: base + (t + 1) * cp, :] = (
                    tap.astype(slab_ref.dtype))

    # Input features, zero-extended to the padded channel count (single fixed op).
    x = x_ref[0].astype(f32)                                # (C_in, L)
    if C_in_p > C_in:
        xp = jnp.concatenate([x, jnp.zeros((C_in_p - C_in, L), f32)], axis=0)
    else:
        xp = x
    write_taps(xp, 0, C_in_p)

    # Incremental 1x1: y = w1_x @ x + sum_l w1_l @ out_l + b1   (no feat buffer).
    y = jnp.dot(w1_refs[0][...].astype(f32), xp,
                preferred_element_type=f32) + b1_ref[...].astype(f32)

    rows = 9 * C_in_p
    for l in range(n_dense):
        w = rest[2 * l][...]                                # (G_p, rows)
        b = rest[2 * l + 1][...].astype(f32)                # (G_p, 1)
        out = jnp.dot(w, slab_ref[0:rows, :],               # one MXU matmul
                      preferred_element_type=f32)
        out = jnp.maximum(out + b, 0.0)                     # padded rows stay 0
        y = y + jnp.dot(w1_refs[l + 1][...].astype(f32), out,
                        preferred_element_type=f32)
        if l + 1 < n_dense:                                 # last layer taps unused
            write_taps(out, rows, G_p)
            rows += 9 * G_p

    o_ref[0] = y.astype(o_ref.dtype)                        # lane-dense store


# ---------------------------------------------------------------------------
# Wrapper: weight packing (channel groups padded to 8) + pallas_call
# ---------------------------------------------------------------------------
def _round_up(v, m):
    return -(-v // m) * m


def _pack_group(wg, cg_p):
    """PyTorch (G, cg, 3, 3) -> (G, 9*cg_p): columns tap-major (dy,dx) then channel,
    channels zero-padded to cg_p (matches the kernel's slab row order)."""
    g_out, cg = wg.shape[0], wg.shape[1]
    wt = jnp.transpose(wg, (0, 2, 3, 1)).reshape(g_out, 9, cg)
    if cg_p > cg:
        wt = jnp.pad(wt, ((0, 0), (0, 0), (0, cg_p - cg)))
    return wt.reshape(g_out, 9 * cg_p)


def db_forward(x_nchw, params, *, n_blk=None, use_bf16=False):
    """DB forward: (N, C_in, H, W) -> (N, C_in, H, W), one fused Pallas kernel."""
    N, C_in, H, W = x_nchw.shape
    HW = H * W
    n_dense = len(params["dense"])
    growth = params["dense"][0][0].shape[0]

    C_in_p = _round_up(C_in, 8)
    G_p = _round_up(growth, 8)
    cdtype = jnp.bfloat16 if use_bf16 else jnp.float32

    # --- batch packing: put n_blk images on the lane axis per grid step --------
    if n_blk is None:
        n_blk = max(1, min(N, max(1, 1024 // HW)))
        while N % n_blk:
            n_blk -= 1
        # keep >= 2 grid steps when N allows, so both v7x TensorCores get work
        while n_blk > 1 and N // n_blk < 2:
            n_blk -= 1
            while N % n_blk:
                n_blk -= 1
    GN = N // n_blk
    L = n_blk * HW

    x_packed = jnp.transpose(
        x_nchw.reshape(GN, n_blk, C_in, HW), (0, 2, 1, 3)).reshape(GN, C_in, L)

    # --- per-tap boundary masks (per-image row/col), f32 multiplicands ---------
    idx = jnp.arange(L, dtype=jnp.int32)
    col = idx % W
    row = (idx // W) % H
    mask_rows = []
    for dy in range(3):
        for dx in range(3):
            m = jnp.ones((L,), jnp.float32)
            if dy == 0:
                m = m * (row > 0)
            elif dy == 2:
                m = m * (row < H - 1)
            if dx == 0:
                m = m * (col > 0)
            elif dx == 2:
                m = m * (col < W - 1)
            mask_rows.append(m)
    masks = jnp.stack(mask_rows, axis=0).reshape(9, 1, L)

    # --- pack dense 3x3 weights to (G_p, 9*C_l_p) matching the slab layout -----
    dense_args = []
    in_specs = [pl.BlockSpec((1, C_in, L), lambda n: (n, 0, 0)),
                pl.BlockSpec((9, 1, L), lambda n: (0, 0, 0))]
    for l, (w, b) in enumerate(params["dense"]):
        parts = [_pack_group(w[:, :C_in], C_in_p)]
        off = C_in
        for _ in range(l):
            parts.append(_pack_group(w[:, off:off + growth], G_p))
            off += growth
        w2d = jnp.concatenate(parts, axis=1)                    # (G, 9*C_l_p)
        w2d = jnp.pad(w2d, ((0, G_p - growth), (0, 0))).astype(cdtype)
        b2d = jnp.pad(b.reshape(growth, 1), ((0, G_p - growth), (0, 0)))
        dense_args += [w2d, b2d]
        c_l_p = C_in_p + l * G_p
        in_specs += [pl.BlockSpec((G_p, 9 * c_l_p), lambda n: (0, 0)),
                     pl.BlockSpec((G_p, 1), lambda n: (0, 0))]

    # --- split + pad the 1x1 weight per channel group ---------------------------
    w1, b1 = params["conv1x1"]
    w1_args = [jnp.pad(w1[:, :C_in], ((0, 0), (0, C_in_p - C_in)))]
    off = C_in
    for _ in range(n_dense):
        w1_args.append(jnp.pad(w1[:, off:off + growth],
                               ((0, 0), (0, G_p - growth))))
        off += growth
    for wg in w1_args:
        in_specs.append(pl.BlockSpec(wg.shape, lambda n: (0, 0)))
    in_specs.append(pl.BlockSpec((C_in, 1), lambda n: (0, 0)))

    # --- scratch size + VMEM budget ---------------------------------------------
    r_slab = 9 * (C_in_p + max(n_dense - 1, 0) * G_p)
    cd_bytes = 2 if use_bf16 else 4
    est = (r_slab * L * cd_bytes                                # slab scratch
           + 2 * 2 * C_in * L * 4                               # in/out double buffers
           + 2 * sum(int(a.size) * a.dtype.itemsize for a in dense_args)
           + 2 * sum(int(a.size) * 4 for a in w1_args)
           + 2 * 9 * L * 4)
    vmem_limit = None
    if est > 30 * (1 << 20):
        # TODO(synk): switch to spatial row-block tiling (1-row halo) for v7x instead
        #             of only raising the limit once H*W grows this large.
        vmem_limit = int(min(est * 5 // 4, 96 * (1 << 20)))

    kernel = functools.partial(_db_kernel, W=W, n_dense=n_dense,
                               C_in=C_in, C_in_p=C_in_p, G_p=G_p)
    out_packed = pl.pallas_call(
        kernel,
        out_shape=jax.ShapeDtypeStruct((GN, C_in, L), x_nchw.dtype),
        grid=(GN,),
        in_specs=in_specs,
        out_specs=pl.BlockSpec((1, C_in, L), lambda n: (n, 0, 0)),
        scratch_shapes=[pltpu.VMEM((r_slab, L), cdtype)],
        compiler_params=pltpu.CompilerParams(
            dimension_semantics=("parallel",),
            vmem_limit_bytes=vmem_limit),
    )(x_packed, masks, *dense_args, *w1_args, b1.reshape(C_in, 1))

    return out_packed.reshape(GN, C_in, n_blk, HW).transpose(
        0, 2, 1, 3).reshape(N, C_in, H, W)


# ---------------------------------------------------------------------------
# Deterministic parameter init (PyTorch-like uniform(-1/sqrt(fan_in), +...)),
# stored in PyTorch layout: dense w (G, Cin, 3, 3), b (G,); 1x1 w (C_in, C_total).
# ---------------------------------------------------------------------------
def init_db_params(key, in_channels, num_dense_layer, growth_rate):
    params = {"dense": [], "conv1x1": None}
    c = in_channels
    for _ in range(num_dense_layer):
        key, kw, kb = jax.random.split(key, 3)
        bound = 1.0 / jnp.sqrt(c * 3 * 3)
        w = jax.random.uniform(kw, (growth_rate, c, 3, 3), jnp.float32,
                               minval=-bound, maxval=bound)
        b = jax.random.uniform(kb, (growth_rate,), jnp.float32,
                               minval=-bound, maxval=bound)
        params["dense"].append((w, b))
        c += growth_rate
    key, kw, kb = jax.random.split(key, 3)
    bound = 1.0 / jnp.sqrt(c)
    w1 = jax.random.uniform(kw, (in_channels, c), jnp.float32,
                            minval=-bound, maxval=bound)
    b1 = jax.random.uniform(kb, (in_channels,), jnp.float32,
                            minval=-bound, maxval=bound)
    params["conv1x1"] = (w1, b1)
    return params


# ---------------------------------------------------------------------------
# Pure-JAX reference (matches the PyTorch module) for correctness checking.
# ---------------------------------------------------------------------------
def db_reference(x, params):
    feat = x
    for (w, b) in params["dense"]:
        out = jax.lax.conv_general_dilated(
            feat, w, window_strides=(1, 1), padding=((1, 1), (1, 1)),
            dimension_numbers=("NCHW", "OIHW", "NCHW"),
            precision=jax.lax.Precision.HIGHEST)
        out = jnp.maximum(out + b[None, :, None, None], 0.0)
        feat = jnp.concatenate([feat, out], axis=1)
    w1, b1 = params["conv1x1"]
    out = jax.lax.conv_general_dilated(
        feat, w1[:, :, None, None], window_strides=(1, 1), padding=((0, 0), (0, 0)),
        dimension_numbers=("NCHW", "OIHW", "NCHW"),
        precision=jax.lax.Precision.HIGHEST)
    return out + b1[None, :, None, None]


if __name__ == "__main__":
    in_channels = 4
    num_dense_layer = 3
    growth_rate = 4
    N, H, W = 2, 16, 16

    key = jax.random.PRNGKey(0)
    key, kx = jax.random.split(key)
    x = jax.random.normal(kx, (N, in_channels, H, W), jnp.float32)
    params = init_db_params(key, in_channels, num_dense_layer, growth_rate)

    out = jax.jit(db_forward)(x, params)
    out = jax.block_until_ready(out)
    assert out.shape == (N, in_channels, H, W), out.shape

    ref = jax.block_until_ready(db_reference(x, params))
    max_err = float(jnp.max(jnp.abs(out - ref)))
    assert jnp.allclose(out, ref, atol=1e-3, rtol=1e-3), max_err

    print("KERNEL_OK")
</pallas_src>

<mosaic_0001>
module attributes {stable_mosaic.version = 11 : i64} {
  func.func @_db_kernel(%arg0: i32, %arg1: memref<1x4x256xf32, #tpu.memory_space<vmem>>, %arg2: memref<9x1x256xf32, #tpu.memory_space<vmem>>, %arg3: memref<8x72xf32, #tpu.memory_space<vmem>>, %arg4: memref<8x1xf32, #tpu.memory_space<vmem>>, %arg5: memref<8x144xf32, #tpu.memory_space<vmem>>, %arg6: memref<8x1xf32, #tpu.memory_space<vmem>>, %arg7: memref<8x216xf32, #tpu.memory_space<vmem>>, %arg8: memref<8x1xf32, #tpu.memory_space<vmem>>, %arg9: memref<4x8xf32, #tpu.memory_space<vmem>>, %arg10: memref<4x8xf32, #tpu.memory_space<vmem>>, %arg11: memref<4x8xf32, #tpu.memory_space<vmem>>, %arg12: memref<4x8xf32, #tpu.memory_space<vmem>>, %arg13: memref<4x1xf32, #tpu.memory_space<vmem>>, %arg14: memref<1x4x256xf32, #tpu.memory_space<vmem>>, %arg15: memref<216x256xf32, #tpu.memory_space<vmem>>) attributes {dimension_semantics = [#tpu.dimension_semantics<parallel>], iteration_bounds = array<i64: 2>, scalar_prefetch = 0 : i64, scratch_operands = 1 : i64, tpu.core_type = #tpu.core_type<tc>, window_params = [{transform_indices = @transform_0, window_bounds = array<i64: 1, 4, 256>}, {pipeline_mode = #tpu.pipeline_mode<synchronous>, transform_indices = @transform_1, window_bounds = array<i64: 9, 1, 256>}, {pipeline_mode = #tpu.pipeline_mode<synchronous>, transform_indices = @transform_2, window_bounds = array<i64: 8, 72>}, {pipeline_mode = #tpu.pipeline_mode<synchronous>, transform_indices = @transform_3, window_bounds = array<i64: 8, 1>}, {pipeline_mode = #tpu.pipeline_mode<synchronous>, transform_indices = @transform_4, window_bounds = array<i64: 8, 144>}, {pipeline_mode = #tpu.pipeline_mode<synchronous>, transform_indices = @transform_5, window_bounds = array<i64: 8, 1>}, {pipeline_mode = #tpu.pipeline_mode<synchronous>, transform_indices = @transform_6, window_bounds = array<i64: 8, 216>}, {pipeline_mode = #tpu.pipeline_mode<synchronous>, transform_indices = @transform_7, window_bounds = array<i64: 8, 1>}, {pipeline_mode = #tpu.pipeline_mode<synchronous>, transform_indices = @transform_8, window_bounds = array<i64: 4, 8>}, {pipeline_mode = #tpu.pipeline_mode<synchronous>, transform_indices = @transform_9, window_bounds = array<i64: 4, 8>}, {pipeline_mode = #tpu.pipeline_mode<synchronous>, transform_indices = @transform_10, window_bounds = array<i64: 4, 8>}, {pipeline_mode = #tpu.pipeline_mode<synchronous>, transform_indices = @transform_11, window_bounds = array<i64: 4, 8>}, {pipeline_mode = #tpu.pipeline_mode<synchronous>, transform_indices = @transform_12, window_bounds = array<i64: 4, 1>}, {transform_indices = @transform_13, window_bounds = array<i64: 1, 4, 256>}]} {
    %c0 = arith.constant 0 : index
    %c0_0 = arith.constant 0 : index
    %c0_1 = arith.constant 0 : index
    %0 = vector.load %arg2[%c0, %c0_0, %c0_1] : memref<9x1x256xf32, #tpu.memory_space<vmem>>, vector<1x1x256xf32>
    %1 = vector.shape_cast %0 : vector<1x1x256xf32> to vector<1x256xf32>
    %c1 = arith.constant 1 : index
    %c0_2 = arith.constant 0 : index
    %c0_3 = arith.constant 0 : index
    %2 = vector.load %arg2[%c1, %c0_2, %c0_3] : memref<9x1x256xf32, #tpu.memory_space<vmem>>, vector<1x1x256xf32>
    %3 = vector.shape_cast %2 : vector<1x1x256xf32> to vector<1x256xf32>
    %c2 = arith.constant 2 : index
    %c0_4 = arith.constant 0 : index
    %c0_5 = arith.constant 0 : index
    %4 = vector.load %arg2[%c2, %c0_4, %c0_5] : memref<9x1x256xf32, #tpu.memory_space<vmem>>, vector<1x1x256xf32>
    %5 = vector.shape_cast %4 : vector<1x1x256xf32> to vector<1x256xf32>
    %c3 = arith.constant 3 : index
    %c0_6 = arith.constant 0 : index
    %c0_7 = arith.constant 0 : index
    %6 = vector.load %arg2[%c3, %c0_6, %c0_7] : memref<9x1x256xf32, #tpu.memory_space<vmem>>, vector<1x1x256xf32>
    %7 = vector.shape_cast %6 : vector<1x1x256xf32> to vector<1x256xf32>
    %c5 = arith.constant 5 : index
    %c0_8 = arith.constant 0 : index
    %c0_9 = arith.constant 0 : index
    %8 = vector.load %arg2[%c5, %c0_8, %c0_9] : memref<9x1x256xf32, #tpu.memory_space<vmem>>, vector<1x1x256xf32>
    %9 = vector.shape_cast %8 : vector<1x1x256xf32> to vector<1x256xf32>
    %c6 = arith.constant 6 : index
    %c0_10 = arith.constant 0 : index
    %c0_11 = arith.constant 0 : index
    %10 = vector.load %arg2[%c6, %c0_10, %c0_11] : memref<9x1x256xf32, #tpu.memory_space<vmem>>, vector<1x1x256xf32>
    %11 = vector.shape_cast %10 : vector<1x1x256xf32> to vector<1x256xf32>
    %c7 = arith.constant 7 : index
    %c0_12 = arith.constant 0 : index
    %c0_13 = arith.constant 0 : index
    %12 = vector.load %arg2[%c7, %c0_12, %c0_13] : memref<9x1x256xf32, #tpu.memory_space<vmem>>, vector<1x1x256xf32>
    %13 = vector.shape_cast %12 : vector<1x1x256xf32> to vector<1x256xf32>
    %c8 = arith.constant 8 : index
    %c0_14 = arith.constant 0 : index
    %c0_15 = arith.constant 0 : index
    %14 = vector.load %arg2[%c8, %c0_14, %c0_15] : memref<9x1x256xf32, #tpu.memory_space<vmem>>, vector<1x1x256xf32>
    %15 = vector.shape_cast %14 : vector<1x1x256xf32> to vector<1x256xf32>
    %c0_16 = arith.constant 0 : index
    %c0_17 = arith.constant 0 : index
    %c0_18 = arith.constant 0 : index
    %16 = vector.load %arg1[%c0_16, %c0_17, %c0_18] : memref<1x4x256xf32, #tpu.memory_space<vmem>>, vector<1x4x256xf32>
    %17 = vector.shape_cast %16 : vector<1x4x256xf32> to vector<4x256xf32>
    %cst = arith.constant 0.000000e+00 : f32
    %18 = vector.broadcast %cst : f32 to vector<4x256xf32>
    %19 = tpu.concatenate %17, %18 in 0 : vector<4x256xf32>, vector<4x256xf32> -> vector<8x256xf32>
    %c17_i32 = arith.constant 17 : i32
    %20 = tpu.dynamic_rotate %19 by %c17_i32 dim 1 : vector<8x256xf32>, i32 -> vector<8x256xf32>
    %21 = vector.broadcast %1 : vector<1x256xf32> to vector<8x256xf32>
    %22 = arith.mulf %20, %21 : vector<8x256xf32>
    %c0_19 = arith.constant 0 : index
    %c0_20 = arith.constant 0 : index
    %23 = vector.load %arg15[%c0_19, %c0_20] : memref<216x256xf32, #tpu.memory_space<vmem>>, vector<8x256xf32>
    tpu.vector_store %arg15[%c0_19, %c0_20], %22 {strides = array<i32>} : memref<216x256xf32, #tpu.memory_space<vmem>>, vector<8x256xf32>,
    %c16_i32 = arith.constant 16 : i32
    %24 = tpu.dynamic_rotate %19 by %c16_i32 dim 1 : vector<8x256xf32>, i32 -> vector<8x256xf32>
    %25 = vector.broadcast %3 : vector<1x256xf32> to vector<8x256xf32>
    %26 = arith.mulf %24, %25 : vector<8x256xf32>
    %c8_21 = arith.constant 8 : index
    %c0_22 = arith.constant 0 : index
    %27 = vector.load %arg15[%c8_21, %c0_22] : memref<216x256xf32, #tpu.memory_space<vmem>>, vector<8x256xf32>
    tpu.vector_store %arg15[%c8_21, %c0_22], %26 {strides = array<i32>} : memref<216x256xf32, #tpu.memory_space<vmem>>, vector<8x256xf32>,
    %c15_i32 = arith.constant 15 : i32
    %28 = tpu.dynamic_rotate %19 by %c15_i32 dim 1 : vector<8x256xf32>, i32 -> vector<8x256xf32>
    %29 = vector.broadcast %5 : vector<1x256xf32> to vector<8x256xf32>
    %30 = arith.mulf %28, %29 : vector<8x256xf32>
    %c16 = arith.constant 16 : index
    %c0_23 = arith.constant 0 : index
    %31 = vector.load %arg15[%c16, %c0_23] : memref<216x256xf32, #tpu.memory_space<vmem>>, vector<8x256xf32>
    tpu.vector_store %arg15[%c16, %c0_23], %30 {strides = array<i32>} : memref<216x256xf32, #tpu.memory_space<vmem>>, vector<8x256xf32>,
    %c1_i32 = arith.constant 1 : i32
    %32 = tpu.dynamic_rotate %19 by %c1_i32 dim 1 : vector<8x256xf32>, i32 -> vector<8x256xf32>
    %33 = vector.broadcast %7 : vector<1x256xf32> to vector<8x256xf32>
    %34 = arith.mulf %32, %33 : vector<8x256xf32>
    %c24 = arith.constant 24 : index
    %c0_24 = arith.constant 0 : index
    %35 = vector.load %arg15[%c24, %c0_24] : memref<216x256xf32, #tpu.memory_space<vmem>>, vector<8x256xf32>
    tpu.vector_store %arg15[%c24, %c0_24], %34 {strides = array<i32>} : memref<216x256xf32, #tpu.memory_space<vmem>>, vector<8x256xf32>,
    %c32 = arith.constant 32 : index
    %c0_25 = arith.constant 0 : index
    %36 = vector.load %arg15[%c32, %c0_25] : memref<216x256xf32, #tpu.memory_space<vmem>>, vector<8x256xf32>
    tpu.vector_store %arg15[%c32, %c0_25], %19 {strides = array<i32>} : memref<216x256xf32, #tpu.memory_space<vmem>>, vector<8x256xf32>,
    %c255_i32 = arith.constant 255 : i32
    %37 = tpu.dynamic_rotate %19 by %c255_i32 dim 1 : vector<8x256xf32>, i32 -> vector<8x256xf32>
    %38 = vector.broadcast %9 : vector<1x256xf32> to vector<8x256xf32>
    %39 = arith.mulf %37, %38 : vector<8x256xf32>
    %c40 = arith.constant 40 : index
    %c0_26 = arith.constant 0 : index
    %40 = vector.load %arg15[%c40, %c0_26] : memref<216x256xf32, #tpu.memory_space<vmem>>, vector<8x256xf32>
    tpu.vector_store %arg15[%c40, %c0_26], %39 {strides = array<i32>} : memref<216x256xf32, #tpu.memory_space<vmem>>, vector<8x256xf32>,
    %c241_i32 = arith.constant 241 : i32
    %41 = tpu.dynamic_rotate %19 by %c241_i32 dim 1 : vector<8x256xf32>, i32 -> vector<8x256xf32>
    %42 = vector.broadcast %11 : vector<1x256xf32> to vector<8x256xf32>
    %43 = arith.mulf %41, %42 : vector<8x256xf32>
    %c48 = arith.constant 48 : index
    %c0_27 = arith.constant 0 : index
    %44 = vector.load %arg15[%c48, %c0_27] : memref<216x256xf32, #tpu.memory_space<vmem>>, vector<8x256xf32>
    tpu.vector_store %arg15[%c48, %c0_27], %43 {strides = array<i32>} : memref<216x256xf32, #tpu.memory_space<vmem>>, vector<8x256xf32>,
    %c240_i32 = arith.constant 240 : i32
    %45 = tpu.dynamic_rotate %19 by %c240_i32 dim 1 : vector<8x256xf32>, i32 -> vector<8x256xf32>
    %46 = vector.broadcast %13 : vector<1x256xf32> to vector<8x256xf32>
    %47 = arith.mulf %45, %46 : vector<8x256xf32>
    %c56 = arith.constant 56 : index
    %c0_28 = arith.constant 0 : index
    %48 = vector.load %arg15[%c56, %c0_28] : memref<216x256xf32, #tpu.memory_space<vmem>>, vector<8x256xf32>
    tpu.vector_store %arg15[%c56, %c0_28], %47 {strides = array<i32>} : memref<216x256xf32, #tpu.memory_space<vmem>>, vector<8x256xf32>,
    %c239_i32 = arith.constant 239 : i32
    %49 = tpu.dynamic_rotate %19 by %c239_i32 dim 1 : vector<8x256xf32>, i32 -> vector<8x256xf32>
    %50 = vector.broadcast %15 : vector<1x256xf32> to vector<8x256xf32>
    %51 = arith.mulf %49, %50 : vector<8x256xf32>
    %c64 = arith.constant 64 : index
    %c0_29 = arith.constant 0 : index
    %52 = vector.load %arg15[%c64, %c0_29] : memref<216x256xf32, #tpu.memory_space<vmem>>, vector<8x256xf32>
    tpu.vector_store %arg15[%c64, %c0_29], %51 {strides = array<i32>} : memref<216x256xf32, #tpu.memory_space<vmem>>, vector<8x256xf32>,
    %c0_30 = arith.constant 0 : index
    %c0_31 = arith.constant 0 : index
    %53 = vector.load %arg9[%c0_30, %c0_31] : memref<4x8xf32, #tpu.memory_space<vmem>>, vector<4x8xf32>
    %cst_32 = arith.constant dense<0.000000e+00> : vector<4x256xf32>
    %54 = tpu.matmul %53, %19, %cst_32 {dimension_numbers = #tpu.dot_dimension_numbers<[1], [0], [0], [1], [0, 0, 1, 1], [], []>} : vector<4x8xf32>, vector<8x256xf32>, vector<4x256xf32> -> vector<4x256xf32>
    %c0_33 = arith.constant 0 : index
    %c0_34 = arith.constant 0 : index
    %55 = vector.load %arg13[%c0_33, %c0_34] : memref<4x1xf32, #tpu.memory_space<vmem>>, vector<4x1xf32>
    %56 = vector.broadcast %55 : vector<4x1xf32> to vector<4x256xf32>
    %57 = arith.addf %54, %56 : vector<4x256xf32>
    %c0_35 = arith.constant 0 : index
    %c0_36 = arith.constant 0 : index
    %58 = vector.load %arg3[%c0_35, %c0_36] : memref<8x72xf32, #tpu.memory_space<vmem>>, vector<8x72xf32>
    %c0_37 = arith.constant 0 : index
    %c0_38 = arith.constant 0 : index
    %59 = vector.load %arg4[%c0_37, %c0_38] : memref<8x1xf32, #tpu.memory_space<vmem>>, vector<8x1xf32>
    %c0_39 = arith.constant 0 : index
    %c0_40 = arith.constant 0 : index
    %60 = vector.load %arg15[%c0_39, %c0_40] : memref<216x256xf32, #tpu.memory_space<vmem>>, vector<72x256xf32>
    %cst_41 = arith.constant dense<0.000000e+00> : vector<8x256xf32>
    %61 = tpu.matmul %58, %60, %cst_41 {dimension_numbers = #tpu.dot_dimension_numbers<[1], [0], [0], [1], [0, 0, 1, 1], [], []>} : vector<8x72xf32>, vector<72x256xf32>, vector<8x256xf32> -> vector<8x256xf32>
    %62 = vector.broadcast %59 : vector<8x1xf32> to vector<8x256xf32>
    %63 = arith.addf %61, %62 : vector<8x256xf32>
    %cst_42 = arith.constant 0.000000e+00 : f32
    %64 = vector.broadcast %cst_42 : f32 to vector<8x256xf32>
    %65 = arith.maximumf %63, %64 : vector<8x256xf32>
    %c0_43 = arith.constant 0 : index
    %c0_44 = arith.constant 0 : index
    %66 = vector.load %arg10[%c0_43, %c0_44] : memref<4x8xf32, #tpu.memory_space<vmem>>, vector<4x8xf32>
    %cst_45 = arith.constant dense<0.000000e+00> : vector<4x256xf32>
    %67 = tpu.matmul %66, %65, %cst_45 {dimension_numbers = #tpu.dot_dimension_numbers<[1], [0], [0], [1], [0, 0, 1, 1], [], []>} : vector<4x8xf32>, vector<8x256xf32>, vector<4x256xf32> -> vector<4x256xf32>
    %68 = arith.addf %57, %67 : vector<4x256xf32>
    %c17_i32_46 = arith.constant 17 : i32
    %69 = tpu.dynamic_rotate %65 by %c17_i32_46 dim 1 : vector<8x256xf32>, i32 -> vector<8x256xf32>
    %70 = vector.broadcast %1 : vector<1x256xf32> to vector<8x256xf32>
    %71 = arith.mulf %69, %70 : vector<8x256xf32>
    %c72 = arith.constant 72 : index
    %c0_47 = arith.constant 0 : index
    %72 = vector.load %arg15[%c72, %c0_47] : memref<216x256xf32, #tpu.memory_space<vmem>>, vector<8x256xf32>
    tpu.vector_store %arg15[%c72, %c0_47], %71 {strides = array<i32>} : memref<216x256xf32, #tpu.memory_space<vmem>>, vector<8x256xf32>,
    %c16_i32_48 = arith.constant 16 : i32
    %73 = tpu.dynamic_rotate %65 by %c16_i32_48 dim 1 : vector<8x256xf32>, i32 -> vector<8x256xf32>
    %74 = vector.broadcast %3 : vector<1x256xf32> to vector<8x256xf32>
    %75 = arith.mulf %73, %74 : vector<8x256xf32>
    %c80 = arith.constant 80 : index
    %c0_49 = arith.constant 0 : index
    %76 = vector.load %arg15[%c80, %c0_49] : memref<216x256xf32, #tpu.memory_space<vmem>>, vector<8x256xf32>
    tpu.vector_store %arg15[%c80, %c0_49], %75 {strides = array<i32>} : memref<216x256xf32, #tpu.memory_space<vmem>>, vector<8x256xf32>,
    %c15_i32_50 = arith.constant 15 : i32
    %77 = tpu.dynamic_rotate %65 by %c15_i32_50 dim 1 : vector<8x256xf32>, i32 -> vector<8x256xf32>
    %78 = vector.broadcast %5 : vector<1x256xf32> to vector<8x256xf32>
    %79 = arith.mulf %77, %78 : vector<8x256xf32>
    %c88 = arith.constant 88 : index
    %c0_51 = arith.constant 0 : index
    %80 = vector.load %arg15[%c88, %c0_51] : memref<216x256xf32, #tpu.memory_space<vmem>>, vector<8x256xf32>
    tpu.vector_store %arg15[%c88, %c0_51], %79 {strides = array<i32>} : memref<216x256xf32, #tpu.memory_space<vmem>>, vector<8x256xf32>,
    %c1_i32_52 = arith.constant 1 : i32
    %81 = tpu.dynamic_rotate %65 by %c1_i32_52 dim 1 : vector<8x256xf32>, i32 -> vector<8x256xf32>
    %82 = vector.broadcast %7 : vector<1x256xf32> to vector<8x256xf32>
    %83 = arith.mulf %81, %82 : vector<8x256xf32>
    %c96 = arith.constant 96 : index
    %c0_53 = arith.constant 0 : index
    %84 = vector.load %arg15[%c96, %c0_53] : memref<216x256xf32, #tpu.memory_space<vmem>>, vector<8x256xf32>
    tpu.vector_store %arg15[%c96, %c0_53], %83 {strides = array<i32>} : memref<216x256xf32, #tpu.memory_space<vmem>>, vector<8x256xf32>,
    %c104 = arith.constant 104 : index
    %c0_54 = arith.constant 0 : index
    %85 = vector.load %arg15[%c104, %c0_54] : memref<216x256xf32, #tpu.memory_space<vmem>>, vector<8x256xf32>
    tpu.vector_store %arg15[%c104, %c0_54], %65 {strides = array<i32>} : memref<216x256xf32, #tpu.memory_space<vmem>>, vector<8x256xf32>,
    %c255_i32_55 = arith.constant 255 : i32
    %86 = tpu.dynamic_rotate %65 by %c255_i32_55 dim 1 : vector<8x256xf32>, i32 -> vector<8x256xf32>
    %87 = vector.broadcast %9 : vector<1x256xf32> to vector<8x256xf32>
    %88 = arith.mulf %86, %87 : vector<8x256xf32>
    %c112 = arith.constant 112 : index
    %c0_56 = arith.constant 0 : index
    %89 = vector.load %arg15[%c112, %c0_56] : memref<216x256xf32, #tpu.memory_space<vmem>>, vector<8x256xf32>
    tpu.vector_store %arg15[%c112, %c0_56], %88 {strides = array<i32>} : memref<216x256xf32, #tpu.memory_space<vmem>>, vector<8x256xf32>,
    %c241_i32_57 = arith.constant 241 : i32
    %90 = tpu.dynamic_rotate %65 by %c241_i32_57 dim 1 : vector<8x256xf32>, i32 -> vector<8x256xf32>
    %91 = vector.broadcast %11 : vector<1x256xf32> to vector<8x256xf32>
    %92 = arith.mulf %90, %91 : vector<8x256xf32>
    %c120 = arith.constant 120 : index
    %c0_58 = arith.constant 0 : index
    %93 = vector.load %arg15[%c120, %c0_58] : memref<216x256xf32, #tpu.memory_space<vmem>>, vector<8x256xf32>
    tpu.vector_store %arg15[%c120, %c0_58], %92 {strides = array<i32>} : memref<216x256xf32, #tpu.memory_space<vmem>>, vector<8x256xf32>,
    %c240_i32_59 = arith.constant 240 : i32
    %94 = tpu.dynamic_rotate %65 by %c240_i32_59 dim 1 : vector<8x256xf32>, i32 -> vector<8x256xf32>
    %95 = vector.broadcast %13 : vector<1x256xf32> to vector<8x256xf32>
    %96 = arith.mulf %94, %95 : vector<8x256xf32>
    %c128 = arith.constant 128 : index
    %c0_60 = arith.constant 0 : index
    %97 = vector.load %arg15[%c128, %c0_60] : memref<216x256xf32, #tpu.memory_space<vmem>>, vector<8x256xf32>
    tpu.vector_store %arg15[%c128, %c0_60], %96 {strides = array<i32>} : memref<216x256xf32, #tpu.memory_space<vmem>>, vector<8x256xf32>,
    %c239_i32_61 = arith.constant 239 : i32
    %98 = tpu.dynamic_rotate %65 by %c239_i32_61 dim 1 : vector<8x256xf32>, i32 -> vector<8x256xf32>
    %99 = vector.broadcast %15 : vector<1x256xf32> to vector<8x256xf32>
    %100 = arith.mulf %98, %99 : vector<8x256xf32>
    %c136 = arith.constant 136 : index
    %c0_62 = arith.constant 0 : index
    %101 = vector.load %arg15[%c136, %c0_62] : memref<216x256xf32, #tpu.memory_space<vmem>>, vector<8x256xf32>
    tpu.vector_store %arg15[%c136, %c0_62], %100 {strides = array<i32>} : memref<216x256xf32, #tpu.memory_space<vmem>>, vector<8x256xf32>,
    %c0_63 = arith.constant 0 : index
    %c0_64 = arith.constant 0 : index
    %102 = vector.load %arg5[%c0_63, %c0_64] : memref<8x144xf32, #tpu.memory_space<vmem>>, vector<8x144xf32>
    %c0_65 = arith.constant 0 : index
    %c0_66 = arith.constant 0 : index
    %103 = vector.load %arg6[%c0_65, %c0_66] : memref<8x1xf32, #tpu.memory_space<vmem>>, vector<8x1xf32>
    %c0_67 = arith.constant 0 : index
    %c0_68 = arith.constant 0 : index
    %104 = vector.load %arg15[%c0_67, %c0_68] : memref<216x256xf32, #tpu.memory_space<vmem>>, vector<144x256xf32>
    %cst_69 = arith.constant dense<0.000000e+00> : vector<8x256xf32>
    %105 = tpu.matmul %102, %104, %cst_69 {dimension_numbers = #tpu.dot_dimension_numbers<[1], [0], [0], [1], [0, 0, 1, 1], [], []>} : vector<8x144xf32>, vector<144x256xf32>, vector<8x256xf32> -> vector<8x256xf32>
    %106 = vector.broadcast %103 : vector<8x1xf32> to vector<8x256xf32>
    %107 = arith.addf %105, %106 : vector<8x256xf32>
    %cst_70 = arith.constant 0.000000e+00 : f32
    %108 = vector.broadcast %cst_70 : f32 to vector<8x256xf32>
    %109 = arith.maximumf %107, %108 : vector<8x256xf32>
    %c0_71 = arith.constant 0 : index
    %c0_72 = arith.constant 0 : index
    %110 = vector.load %arg11[%c0_71, %c0_72] : memref<4x8xf32, #tpu.memory_space<vmem>>, vector<4x8xf32>
    %cst_73 = arith.constant dense<0.000000e+00> : vector<4x256xf32>
    %111 = tpu.matmul %110, %109, %cst_73 {dimension_numbers = #tpu.dot_dimension_numbers<[1], [0], [0], [1], [0, 0, 1, 1], [], []>} : vector<4x8xf32>, vector<8x256xf32>, vector<4x256xf32> -> vector<4x256xf32>
    %112 = arith.addf %68, %111 : vector<4x256xf32>
    %c17_i32_74 = arith.constant 17 : i32
    %113 = tpu.dynamic_rotate %109 by %c17_i32_74 dim 1 : vector<8x256xf32>, i32 -> vector<8x256xf32>
    %114 = vector.broadcast %1 : vector<1x256xf32> to vector<8x256xf32>
    %115 = arith.mulf %113, %114 : vector<8x256xf32>
    %c144 = arith.constant 144 : index
    %c0_75 = arith.constant 0 : index
    %116 = vector.load %arg15[%c144, %c0_75] : memref<216x256xf32, #tpu.memory_space<vmem>>, vector<8x256xf32>
    tpu.vector_store %arg15[%c144, %c0_75], %115 {strides = array<i32>} : memref<216x256xf32, #tpu.memory_space<vmem>>, vector<8x256xf32>,
    %c16_i32_76 = arith.constant 16 : i32
    %117 = tpu.dynamic_rotate %109 by %c16_i32_76 dim 1 : vector<8x256xf32>, i32 -> vector<8x256xf32>
    %118 = vector.broadcast %3 : vector<1x256xf32> to vector<8x256xf32>
    %119 = arith.mulf %117, %118 : vector<8x256xf32>
    %c152 = arith.constant 152 : index
    %c0_77 = arith.constant 0 : index
    %120 = vector.load %arg15[%c152, %c0_77] : memref<216x256xf32, #tpu.memory_space<vmem>>, vector<8x256xf32>
    tpu.vector_store %arg15[%c152, %c0_77], %119 {strides = array<i32>} : memref<216x256xf32, #tpu.memory_space<vmem>>, vector<8x256xf32>,
    %c15_i32_78 = arith.constant 15 : i32
    %121 = tpu.dynamic_rotate %109 by %c15_i32_78 dim 1 : vector<8x256xf32>, i32 -> vector<8x256xf32>
    %122 = vector.broadcast %5 : vector<1x256xf32> to vector<8x256xf32>
    %123 = arith.mulf %121, %122 : vector<8x256xf32>
    %c160 = arith.constant 160 : index
    %c0_79 = arith.constant 0 : index
    %124 = vector.load %arg15[%c160, %c0_79] : memref<216x256xf32, #tpu.memory_space<vmem>>, vector<8x256xf32>
    tpu.vector_store %arg15[%c160, %c0_79], %123 {strides = array<i32>} : memref<216x256xf32, #tpu.memory_space<vmem>>, vector<8x256xf32>,
    %c1_i32_80 = arith.constant 1 : i32
    %125 = tpu.dynamic_rotate %109 by %c1_i32_80 dim 1 : vector<8x256xf32>, i32 -> vector<8x256xf32>
    %126 = vector.broadcast %7 : vector<1x256xf32> to vector<8x256xf32>
    %127 = arith.mulf %125, %126 : vector<8x256xf32>
    %c168 = arith.constant 168 : index
    %c0_81 = arith.constant 0 : index
    %128 = vector.load %arg15[%c168, %c0_81] : memref<216x256xf32, #tpu.memory_space<vmem>>, vector<8x256xf32>
    tpu.vector_store %arg15[%c168, %c0_81], %127 {strides = array<i32>} : memref<216x256xf32, #tpu.memory_space<vmem>>, vector<8x256xf32>,
    %c176 = arith.constant 176 : index
    %c0_82 = arith.constant 0 : index
    %129 = vector.load %arg15[%c176, %c0_82] : memref<216x256xf32, #tpu.memory_space<vmem>>, vector<8x256xf32>
    tpu.vector_store %arg15[%c176, %c0_82], %109 {strides = array<i32>} : memref<216x256xf32, #tpu.memory_space<vmem>>, vector<8x256xf32>,
    %c255_i32_83 = arith.constant 255 : i32
    %130 = tpu.dynamic_rotate %109 by %c255_i32_83 dim 1 : vector<8x256xf32>, i32 -> vector<8x256xf32>
    %131 = vector.broadcast %9 : vector<1x256xf32> to vector<8x256xf32>
    %132 = arith.mulf %130, %131 : vector<8x256xf32>
    %c184 = arith.constant 184 : index
    %c0_84 = arith.constant 0 : index
    %133 = vector.load %arg15[%c184, %c0_84] : memref<216x256xf32, #tpu.memory_space<vmem>>, vector<8x256xf32>
    tpu.vector_store %arg15[%c184, %c0_84], %132 {strides = array<i32>} : memref<216x256xf32, #tpu.memory_space<vmem>>, vector<8x256xf32>,
    %c241_i32_85 = arith.constant 241 : i32
    %134 = tpu.dynamic_rotate %109 by %c241_i32_85 dim 1 : vector<8x256xf32>, i32 -> vector<8x256xf32>
    %135 = vector.broadcast %11 : vector<1x256xf32> to vector<8x256xf32>
    %136 = arith.mulf %134, %135 : vector<8x256xf32>
    %c192 = arith.constant 192 : index
    %c0_86 = arith.constant 0 : index
    %137 = vector.load %arg15[%c192, %c0_86] : memref<216x256xf32, #tpu.memory_space<vmem>>, vector<8x256xf32>
    tpu.vector_store %arg15[%c192, %c0_86], %136 {strides = array<i32>} : memref<216x256xf32, #tpu.memory_space<vmem>>, vector<8x256xf32>,
    %c240_i32_87 = arith.constant 240 : i32
    %138 = tpu.dynamic_rotate %109 by %c240_i32_87 dim 1 : vector<8x256xf32>, i32 -> vector<8x256xf32>
    %139 = vector.broadcast %13 : vector<1x256xf32> to vector<8x256xf32>
    %140 = arith.mulf %138, %139 : vector<8x256xf32>
    %c200 = arith.constant 200 : index
    %c0_88 = arith.constant 0 : index
    %141 = vector.load %arg15[%c200, %c0_88] : memref<216x256xf32, #tpu.memory_space<vmem>>, vector<8x256xf32>
    tpu.vector_store %arg15[%c200, %c0_88], %140 {strides = array<i32>} : memref<216x256xf32, #tpu.memory_space<vmem>>, vector<8x256xf32>,
    %c239_i32_89 = arith.constant 239 : i32
    %142 = tpu.dynamic_rotate %109 by %c239_i32_89 dim 1 : vector<8x256xf32>, i32 -> vector<8x256xf32>
    %143 = vector.broadcast %15 : vector<1x256xf32> to vector<8x256xf32>
    %144 = arith.mulf %142, %143 : vector<8x256xf32>
    %c208 = arith.constant 208 : index
    %c0_90 = arith.constant 0 : index
    %145 = vector.load %arg15[%c208, %c0_90] : memref<216x256xf32, #tpu.memory_space<vmem>>, vector<8x256xf32>
    tpu.vector_store %arg15[%c208, %c0_90], %144 {strides = array<i32>} : memref<216x256xf32, #tpu.memory_space<vmem>>, vector<8x256xf32>,
    %c0_91 = arith.constant 0 : index
    %c0_92 = arith.constant 0 : index
    %146 = vector.load %arg7[%c0_91, %c0_92] : memref<8x216xf32, #tpu.memory_space<vmem>>, vector<8x216xf32>
    %c0_93 = arith.constant 0 : index
    %c0_94 = arith.constant 0 : index
    %147 = vector.load %arg8[%c0_93, %c0_94] : memref<8x1xf32, #tpu.memory_space<vmem>>, vector<8x1xf32>
    %c0_95 = arith.constant 0 : index
    %c0_96 = arith.constant 0 : index
    %148 = vector.load %arg15[%c0_95, %c0_96] : memref<216x256xf32, #tpu.memory_space<vmem>>, vector<216x256xf32>
    %cst_97 = arith.constant dense<0.000000e+00> : vector<8x256xf32>
    %149 = tpu.matmul %146, %148, %cst_97 {dimension_numbers = #tpu.dot_dimension_numbers<[1], [0], [0], [1], [0, 0, 1, 1], [], []>} : vector<8x216xf32>, vector<216x256xf32>, vector<8x256xf32> -> vector<8x256xf32>
    %150 = vector.broadcast %147 : vector<8x1xf32> to vector<8x256xf32>
    %151 = arith.addf %149, %150 : vector<8x256xf32>
    %cst_98 = arith.constant 0.000000e+00 : f32
    %152 = vector.broadcast %cst_98 : f32 to vector<8x256xf32>
    %153 = arith.maximumf %151, %152 : vector<8x256xf32>
    %c0_99 = arith.constant 0 : index
    %c0_100 = arith.constant 0 : index
    %154 = vector.load %arg12[%c0_99, %c0_100] : memref<4x8xf32, #tpu.memory_space<vmem>>, vector<4x8xf32>
    %cst_101 = arith.constant dense<0.000000e+00> : vector<4x256xf32>
    %155 = tpu.matmul %154, %153, %cst_101 {dimension_numbers = #tpu.dot_dimension_numbers<[1], [0], [0], [1], [0, 0, 1, 1], [], []>} : vector<4x8xf32>, vector<8x256xf32>, vector<4x256xf32> -> vector<4x256xf32>
    %156 = arith.addf %112, %155 : vector<4x256xf32>
    %c0_102 = arith.constant 0 : index
    %c0_103 = arith.constant 0 : index
    %c0_104 = arith.constant 0 : index
    %157 = vector.load %arg14[%c0_102, %c0_103, %c0_104] : memref<1x4x256xf32, #tpu.memory_space<vmem>>, vector<1x4x256xf32>
    %158 = vector.shape_cast %157 : vector<1x4x256xf32> to vector<4x256xf32>
    %159 = vector.shape_cast %156 : vector<4x256xf32> to vector<1x4x256xf32>
    tpu.vector_store %arg14[%c0_102, %c0_103, %c0_104], %159 {strides = array<i32>} : memref<1x4x256xf32, #tpu.memory_space<vmem>>, vector<1x4x256xf32>,
    return
  }
  func.func @transform_0(%arg0: i32) -> (i32, i32, i32) {
    %c0_i32 = arith.constant 0 : i32
    %c0_i32_0 = arith.constant 0 : i32
    %c0_i32_1 = arith.constant 0 : i32
    return %arg0, %c0_i32, %c0_i32_0 : i32, i32, i32
  }
  func.func @transform_1(%arg0: i32) -> (i32, i32, i32) {
    %c0_i32 = arith.constant 0 : i32
    %c0_i32_0 = arith.constant 0 : i32
    %c0_i32_1 = arith.constant 0 : i32
    %c0_i32_2 = arith.constant 0 : i32
    return %c0_i32, %c0_i32_0, %c0_i32_1 : i32, i32, i32
  }
  func.func @transform_2(%arg0: i32) -> (i32, i32) {
    %c0_i32 = arith.constant 0 : i32
    %c0_i32_0 = arith.constant 0 : i32
    %c0_i32_1 = arith.constant 0 : i32
    return %c0_i32, %c0_i32_0 : i32, i32
  }
  func.func @transform_3(%arg0: i32) -> (i32, i32) {
    %c0_i32 = arith.constant 0 : i32
    %c0_i32_0 = arith.constant 0 : i32
    %c0_i32_1 = arith.constant 0 : i32
    return %c0_i32, %c0_i32_0 : i32, i32
  }
  func.func @transform_4(%arg0: i32) -> (i32, i32) {
    %c0_i32 = arith.constant 0 : i32
    %c0_i32_0 = arith.constant 0 : i32
    %c0_i32_1 = arith.constant 0 : i32
    return %c0_i32, %c0_i32_0 : i32, i32
  }
  func.func @transform_5(%arg0: i32) -> (i32, i32) {
    %c0_i32 = arith.constant 0 : i32
    %c0_i32_0 = arith.constant 0 : i32
    %c0_i32_1 = arith.constant 0 : i32
    return %c0_i32, %c0_i32_0 : i32, i32
  }
  func.func @transform_6(%arg0: i32) -> (i32, i32) {
    %c0_i32 = arith.constant 0 : i32
    %c0_i32_0 = arith.constant 0 : i32
    %c0_i32_1 = arith.constant 0 : i32
    return %c0_i32, %c0_i32_0 : i32, i32
  }
  func.func @transform_7(%arg0: i32) -> (i32, i32) {
    %c0_i32 = arith.constant 0 : i32
    %c0_i32_0 = arith.constant 0 : i32
    %c0_i32_1 = arith.constant 0 : i32
    return %c0_i32, %c0_i32_0 : i32, i32
  }
  func.func @transform_8(%arg0: i32) -> (i32, i32) {
    %c0_i32 = arith.constant 0 : i32
    %c0_i32_0 = arith.constant 0 : i32
    %c0_i32_1 = arith.constant 0 : i32
    return %c0_i32, %c0_i32_0 : i32, i32
  }
  func.func @transform_9(%arg0: i32) -> (i32, i32) {
    %c0_i32 = arith.constant 0 : i32
    %c0_i32_0 = arith.constant 0 : i32
    %c0_i32_1 = arith.constant 0 : i32
    return %c0_i32, %c0_i32_0 : i32, i32
  }
  func.func @transform_10(%arg0: i32) -> (i32, i32) {
    %c0_i32 = arith.constant 0 : i32
    %c0_i32_0 = arith.constant 0 : i32
    %c0_i32_1 = arith.constant 0 : i32
    return %c0_i32, %c0_i32_0 : i32, i32
  }
  func.func @transform_11(%arg0: i32) -> (i32, i32) {
    %c0_i32 = arith.constant 0 : i32
    %c0_i32_0 = arith.constant 0 : i32
    %c0_i32_1 = arith.constant 0 : i32
    return %c0_i32, %c0_i32_0 : i32, i32
  }
  func.func @transform_12(%arg0: i32) -> (i32, i32) {
    %c0_i32 = arith.constant 0 : i32
    %c0_i32_0 = arith.constant 0 : i32
    %c0_i32_1 = arith.constant 0 : i32
    return %c0_i32, %c0_i32_0 : i32, i32
  }
  func.func @transform_13(%arg0: i32) -> (i32, i32, i32) {
    %c0_i32 = arith.constant 0 : i32
    %c0_i32_0 = arith.constant 0 : i32
    %c0_i32_1 = arith.constant 0 : i32
    return %arg0, %c0_i32, %c0_i32_0 : i32, i32, i32
  }
}

</mosaic_0001>

<llo_original>
// kernel: db_forward.1
$region0: #{db_forward.1}
  #allocation0 [shape = 'u32[]', space=smem, size = 0x4, offset = 0x4, fixed_abs, tag = 'smem constant byte address 0x4 - core index']
  #allocation1 [shape = 'u32[144,128]{1,0:T(1,128)}', space=vmem, size = 0x12000, scoped, tag = 'internal scratch']
  #allocation2 [shape = 'f32[216,256]{1,0:T(8,128)}', space=vmem, size = 0x36000, scoped, tag = 'scratch operand']
  %s0 = inlined_call_operand.vmem [shape: f32[2,4,256], index: 0, kind: input, shape index: {}]
  %s1 = inlined_call_operand.vmem [shape: f32[9,1,256], index: 1, kind: input, shape index: {}]
  %s2 = inlined_call_operand.vmem [shape: f32[8,72], index: 2, kind: input, shape index: {}]
  %s3 = inlined_call_operand.vmem [shape: f32[8,1], index: 3, kind: input, shape index: {}]
  %s4 = inlined_call_operand.vmem [shape: f32[8,144], index: 4, kind: input, shape index: {}]
  %s5 = inlined_call_operand.vmem [shape: f32[8,1], index: 5, kind: input, shape index: {}]
  %s6 = inlined_call_operand.vmem [shape: f32[8,216], index: 6, kind: input, shape index: {}]
  %s7 = inlined_call_operand.vmem [shape: f32[8,1], index: 7, kind: input, shape index: {}]
  %s8 = inlined_call_operand.vmem [shape: f32[4,8], index: 8, kind: input, shape index: {}]
  %s9 = inlined_call_operand.vmem [shape: f32[4,8], index: 9, kind: input, shape index: {}]
  %s10 = inlined_call_operand.vmem [shape: f32[4,8], index: 10, kind: input, shape index: {}]
  %s11 = inlined_call_operand.vmem [shape: f32[4,8], index: 11, kind: input, shape index: {}]
  %s12 = inlined_call_operand.vmem [shape: f32[4,1], index: 12, kind: input, shape index: {}]
  %s13 = inlined_call_operand.vmem [shape: f32[2,4,256], index: 13, kind: output, shape index: {}]
  %s14 = sld [smem:[#allocation0]]
  $region85: #{db_forward.1} parent=0
    _
  %s16 = ssub.s32 1, %s14
  %s17 = scalar_select 0, %s16, %s14
  loop: start=0, step=1, limit=4
  $region2: #{db_forward.1} parent=0 // loop_pre_header
    _
  $region3: #{db_forward.1} parent=0 // loop_header
    %s19 = sphi 0, %s23
    %p20 = scmp.ge.s32.totalorder %s19, 4
    %s29 = sphi 0, %s31
    %s32 = sphi 0, %s29
    %s33 = sphi 0, %s32
    %s49 = sphi 0, %s33
    %s53 = sphi 0, %s53
    %s55 = sphi 0, %s53
    %s56 = sphi 0, %s55
    %s70 = sphi 0, %s56
    %s74 = sphi 0, %s74
    %s76 = sphi 0, %s74
    %s77 = sphi 0, %s76
    %s91 = sphi 0, %s77
    %s95 = sphi 0, %s95
    %s97 = sphi 0, %s95
    %s98 = sphi 0, %s97
    %s112 = sphi 0, %s98
    %s116 = sphi 0, %s116
    %s118 = sphi 0, %s116
    %s119 = sphi 0, %s118
    %s133 = sphi 0, %s119
    %s137 = sphi 0, %s137
    %s139 = sphi 0, %s137
    %s140 = sphi 0, %s139
    %s154 = sphi 0, %s140
    %s158 = sphi 0, %s158
    %s160 = sphi 0, %s158
    %s161 = sphi 0, %s160
    %s175 = sphi 0, %s161
    %s179 = sphi 0, %s179
    %s181 = sphi 0, %s179
    %s182 = sphi 0, %s181
    %s196 = sphi 0, %s182
    %s200 = sphi 0, %s200
    %s202 = sphi 0, %s200
    %s203 = sphi 0, %s202
    %s217 = sphi 0, %s203
    %s221 = sphi 0, %s221
    %s223 = sphi 0, %s221
    %s224 = sphi 0, %s223
    %s238 = sphi 0, %s224
    %s242 = sphi 0, %s242
    %s244 = sphi 0, %s242
    %s245 = sphi 0, %s244
    %s259 = sphi 0, %s245
    %s263 = sphi 0, %s263
    %s265 = sphi 0, %s263
    %s266 = sphi 0, %s265
    %s280 = sphi 0, %s266
    %s284 = sphi 0, %s284
    %s286 = sphi 0, %s284
    %s287 = sphi 0, %s286
    %s301 = sphi 0, %s287
    %s307 = sphi 0, %s309
    %s310 = sphi 0, %s307
    %s311 = sphi 0, %s310
    %s327 = sphi 0, %s311
  $region4: #{db_forward.1} parent=0 // loop_header_branch
    %22 = sbr.rel (%p20) target = $region8
  $region5: #{db_forward.1} parent=0 // loop_body
    %s24 = ssub.s32 %s19, 1
    %s25 = ssub.s32 %s19, 2
    %s26 = sadd.s32 %s19, 1
    %s27 = ssub.s32 %s19, %s26
    %p28 = scmp.eq.s32.totalorder %s27, 0
    %s30 = sadd.s32 %s29, 1
    %s31 = scalar_select %p28, %s29, %s30
    %p34 = pneg %p28
    %p35 = scmp.eq.s32.totalorder %s19, 1
    %p36 = por %p34, %p35
    %p37 = scmp.ne.s32.totalorder %s29, %s32
    %p38 = scmp.eq.s32.totalorder %s19, 0
    %p39 = por %p37, %p38
    %p40 = scmp.ne.s32.totalorder %s29, %s32
    %p41 = scmp.eq.s32.totalorder %s24, 1
    %p42 = por %p40, %p41
    %p43 = scmp.ne.s32.totalorder %s32, %s33
    %p44 = scmp.eq.s32.totalorder %s24, 0
    %p45 = por %p43, %p44
    %p46 = scmp.ne.s32.totalorder %s32, %s33
    %p47 = scmp.eq.s32.totalorder %s25, 1
    %p48 = por %p46, %p47
    %p50 = scmp.ne.s32.totalorder %s33, %s49
    %p51 = scmp.eq.s32.totalorder %s25, 0
    %p52 = por %p50, %p51
    %s54 = sadd.s32 %s53, 1
    %p57 = scmp.eq.s32.totalorder %s19, 1
    %p58 = scmp.ne.s32.totalorder %s53, %s55
    %p59 = scmp.eq.s32.totalorder %s19, 0
    %p60 = por %p58, %p59
    %p61 = scmp.ne.s32.totalorder %s53, %s55
    %p62 = scmp.eq.s32.totalorder %s24, 1
    %p63 = por %p61, %p62
    %p64 = scmp.ne.s32.totalorder %s55, %s56
    %p65 = scmp.eq.s32.totalorder %s24, 0
    %p66 = por %p64, %p65
    %p67 = scmp.ne.s32.totalorder %s55, %s56
    %p68 = scmp.eq.s32.totalorder %s25, 1
    %p69 = por %p67, %p68
    %p71 = scmp.ne.s32.totalorder %s56, %s70
    %p72 = scmp.eq.s32.totalorder %s25, 0
    %p73 = por %p71, %p72
    %s75 = sadd.s32 %s74, 1
    %p78 = scmp.eq.s32.totalorder %s19, 1
    %p79 = scmp.ne.s32.totalorder %s74, %s76
    %p80 = scmp.eq.s32.totalorder %s19, 0
    %p81 = por %p79, %p80
    %p82 = scmp.ne.s32.totalorder %s74, %s76
    %p83 = scmp.eq.s32.totalorder %s24, 1
    %p84 = por %p82, %p83
    %p85 = scmp.ne.s32.totalorder %s76, %s77
    %p86 = scmp.eq.s32.totalorder %s24, 0
    %p87 = por %p85, %p86
    %p88 = scmp.ne.s32.totalorder %s76, %s77
    %p89 = scmp.eq.s32.totalorder %s25, 1
    %p90 = por %p88, %p89
    %p92 = scmp.ne.s32.totalorder %s77, %s91
    %p93 = scmp.eq.s32.totalorder %s25, 0
    %p94 = por %p92, %p93
    %s96 = sadd.s32 %s95, 1
    %p99 = scmp.eq.s32.totalorder %s19, 1
    %p100 = scmp.ne.s32.totalorder %s95, %s97
    %p101 = scmp.eq.s32.totalorder %s19, 0
    %p102 = por %p100, %p101
    %p103 = scmp.ne.s32.totalorder %s95, %s97
    %p104 = scmp.eq.s32.totalorder %s24, 1
    %p105 = por %p103, %p104
    %p106 = scmp.ne.s32.totalorder %s97, %s98
    %p107 = scmp.eq.s32.totalorder %s24, 0
    %p108 = por %p106, %p107
    %p109 = scmp.ne.s32.totalorder %s97, %s98
    %p110 = scmp.eq.s32.totalorder %s25, 1
    %p111 = por %p109, %p110
    %p113 = scmp.ne.s32.totalorder %s98, %s112
    %p114 = scmp.eq.s32.totalorder %s25, 0
    %p115 = por %p113, %p114
    %s117 = sadd.s32 %s116, 1
    %p120 = scmp.eq.s32.totalorder %s19, 1
    %p121 = scmp.ne.s32.totalorder %s116, %s118
    %p122 = scmp.eq.s32.totalorder %s19, 0
    %p123 = por %p121, %p122
    %p124 = scmp.ne.s32.totalorder %s116, %s118
    %p125 = scmp.eq.s32.totalorder %s24, 1
    %p126 = por %p124, %p125
    %p127 = scmp.ne.s32.totalorder %s118, %s119
    %p128 = scmp.eq.s32.totalorder %s24, 0
    %p129 = por %p127, %p128
    %p130 = scmp.ne.s32.totalorder %s118, %s119
    %p131 = scmp.eq.s32.totalorder %s25, 1
    %p132 = por %p130, %p131
    %p134 = scmp.ne.s32.totalorder %s119, %s133
    %p135 = scmp.eq.s32.totalorder %s25, 0
    %p136 = por %p134, %p135
    %s138 = sadd.s32 %s137, 1
    %p141 = scmp.eq.s32.totalorder %s19, 1
    %p142 = scmp.ne.s32.totalorder %s137, %s139
    %p143 = scmp.eq.s32.totalorder %s19, 0
    %p144 = por %p142, %p143
    %p145 = scmp.ne.s32.totalorder %s137, %s139
    %p146 = scmp.eq.s32.totalorder %s24, 1
    %p147 = por %p145, %p146
    %p148 = scmp.ne.s32.totalorder %s139, %s140
    %p149 = scmp.eq.s32.totalorder %s24, 0
    %p150 = por %p148, %p149
    %p151 = scmp.ne.s32.totalorder %s139, %s140
    %p152 = scmp.eq.s32.totalorder %s25, 1
    %p153 = por %p151, %p152
    %p155 = scmp.ne.s32.totalorder %s140, %s154
    %p156 = scmp.eq.s32.totalorder %s25, 0
    %p157 = por %p155, %p156
    %s159 = sadd.s32 %s158, 1
    %p162 = scmp.eq.s32.totalorder %s19, 1
    %p163 = scmp.ne.s32.totalorder %s158, %s160
    %p164 = scmp.eq.s32.totalorder %s19, 0
    %p165 = por %p163, %p164
    %p166 = scmp.ne.s32.totalorder %s158, %s160
    %p167 = scmp.eq.s32.totalorder %s24, 1
    %p168 = por %p166, %p167
    %p169 = scmp.ne.s32.totalorder %s160, %s161
    %p170 = scmp.eq.s32.totalorder %s24, 0
    %p171 = por %p169, %p170
    %p172 = scmp.ne.s32.totalorder %s160, %s161
    %p173 = scmp.eq.s32.totalorder %s25, 1
    %p174 = por %p172, %p173
    %p176 = scmp.ne.s32.totalorder %s161, %s175
    %p177 = scmp.eq.s32.totalorder %s25, 0
    %p178 = por %p176, %p177
    %s180 = sadd.s32 %s179, 1
    %p183 = scmp.eq.s32.totalorder %s19, 1
    %p184 = scmp.ne.s32.totalorder %s179, %s181
    %p185 = scmp.eq.s32.totalorder %s19, 0
    %p186 = por %p184, %p185
    %p187 = scmp.ne.s32.totalorder %s179, %s181
    %p188 = scmp.eq.s32.totalorder %s24, 1
    %p189 = por %p187, %p188
    %p190 = scmp.ne.s32.totalorder %s181, %s182
    %p191 = scmp.eq.s32.totalorder %s24, 0
    %p192 = por %p190, %p191
    %p193 = scmp.ne.s32.totalorder %s181, %s182
    %p194 = scmp.eq.s32.totalorder %s25, 1
    %p195 = por %p193, %p194
    %p197 = scmp.ne.s32.totalorder %s182, %s196
    %p198 = scmp.eq.s32.totalorder %s25, 0
    %p199 = por %p197, %p198
    %s201 = sadd.s32 %s200, 1
    %p204 = scmp.eq.s32.totalorder %s19, 1
    %p205 = scmp.ne.s32.totalorder %s200, %s202
    %p206 = scmp.eq.s32.totalorder %s19, 0
    %p207 = por %p205, %p206
    %p208 = scmp.ne.s32.totalorder %s200, %s202
    %p209 = scmp.eq.s32.totalorder %s24, 1
    %p210 = por %p208, %p209
    %p211 = scmp.ne.s32.totalorder %s202, %s203
    %p212 = scmp.eq.s32.totalorder %s24, 0
    %p213 = por %p211, %p212
    %p214 = scmp.ne.s32.totalorder %s202, %s203
    %p215 = scmp.eq.s32.totalorder %s25, 1
    %p216 = por %p214, %p215
    %p218 = scmp.ne.s32.totalorder %s203, %s217
    %p219 = scmp.eq.s32.totalorder %s25, 0
    %p220 = por %p218, %p219
    %s222 = sadd.s32 %s221, 1
    %p225 = scmp.eq.s32.totalorder %s19, 1
    %p226 = scmp.ne.s32.totalorder %s221, %s223
    %p227 = scmp.eq.s32.totalorder %s19, 0
    %p228 = por %p226, %p227
    %p229 = scmp.ne.s32.totalorder %s221, %s223
    %p230 = scmp.eq.s32.totalorder %s24, 1
    %p231 = por %p229, %p230
    %p232 = scmp.ne.s32.totalorder %s223, %s224
    %p233 = scmp.eq.s32.totalorder %s24, 0
    %p234 = por %p232, %p233
    %p235 = scmp.ne.s32.totalorder %s223, %s224
    %p236 = scmp.eq.s32.totalorder %s25, 1
    %p237 = por %p235, %p236
    %p239 = scmp.ne.s32.totalorder %s224, %s238
    %p240 = scmp.eq.s32.totalorder %s25, 0
    %p241 = por %p239, %p240
    %s243 = sadd.s32 %s242, 1
    %p246 = scmp.eq.s32.totalorder %s19, 1
    %p247 = scmp.ne.s32.totalorder %s242, %s244
    %p248 = scmp.eq.s32.totalorder %s19, 0
    %p249 = por %p247, %p248
    %p250 = scmp.ne.s32.totalorder %s242, %s244
    %p251 = scmp.eq.s32.totalorder %s24, 1
    %p252 = por %p250, %p251
    %p253 = scmp.ne.s32.totalorder %s244, %s245
    %p254 = scmp.eq.s32.totalorder %s24, 0
    %p255 = por %p253, %p254
    %p256 = scmp.ne.s32.totalorder %s244, %s245
    %p257 = scmp.eq.s32.totalorder %s25, 1
    %p258 = por %p256, %p257
    %p260 = scmp.ne.s32.totalorder %s245, %s259
    %p261 = scmp.eq.s32.totalorder %s25, 0
    %p262 = por %p260, %p261
    %s264 = sadd.s32 %s263, 1
    %p267 = scmp.eq.s32.totalorder %s19, 1
    %p268 = scmp.ne.s32.totalorder %s263, %s265
    %p269 = scmp.eq.s32.totalorder %s19, 0
    %p270 = por %p268, %p269
    %p271 = scmp.ne.s32.totalorder %s263, %s265
    %p272 = scmp.eq.s32.totalorder %s24, 1
    %p273 = por %p271, %p272
    %p274 = scmp.ne.s32.totalorder %s265, %s266
    %p275 = scmp.eq.s32.totalorder %s24, 0
    %p276 = por %p274, %p275
    %p277 = scmp.ne.s32.totalorder %s265, %s266
    %p278 = scmp.eq.s32.totalorder %s25, 1
    %p279 = por %p277, %p278
    %p281 = scmp.ne.s32.totalorder %s266, %s280
    %p282 = scmp.eq.s32.totalorder %s25, 0
    %p283 = por %p281, %p282
    %s285 = sadd.s32 %s284, 1
    %p288 = scmp.eq.s32.totalorder %s19, 1
    %p289 = scmp.ne.s32.totalorder %s284, %s286
    %p290 = scmp.eq.s32.totalorder %s19, 0
    %p291 = por %p289, %p290
    %p292 = scmp.ne.s32.totalorder %s284, %s286
    %p293 = scmp.eq.s32.totalorder %s24, 1
    %p294 = por %p292, %p293
    %p295 = scmp.ne.s32.totalorder %s286, %s287
    %p296 = scmp.eq.s32.totalorder %s24, 0
    %p297 = por %p295, %p296
    %p298 = scmp.ne.s32.totalorder %s286, %s287
    %p299 = scmp.eq.s32.totalorder %s25, 1
    %p300 = por %p298, %p299
    %p302 = scmp.ne.s32.totalorder %s287, %s301
    %p303 = scmp.eq.s32.totalorder %s25, 0
    %p304 = por %p302, %p303
    %s305 = ssub.s32 %s19, %s26
    %p306 = scmp.eq.s32.totalorder %s305, 0
    %s308 = sadd.s32 %s307, 1
    %s309 = scalar_select %p306, %s307, %s308
    %p312 = pneg %p306
    %p313 = scmp.eq.s32.totalorder %s19, 1
    %p314 = por %p312, %p313
    %p315 = scmp.ne.s32.totalorder %s307, %s310
    %p316 = scmp.eq.s32.totalorder %s19, 0
    %p317 = por %p315, %p316
    %p318 = scmp.ne.s32.totalorder %s307, %s310
    %p319 = scmp.eq.s32.totalorder %s24, 1
    %p320 = por %p318, %p319
    %p321 = scmp.ne.s32.totalorder %s310, %s311
    %p322 = scmp.eq.s32.totalorder %s24, 0
    %p323 = por %p321, %p322
    %p324 = scmp.ne.s32.totalorder %s310, %s311
    %p325 = scmp.eq.s32.totalorder %s25, 1
    %p326 = por %p324, %p325
    %p328 = scmp.ne.s32.totalorder %s311, %s327
    %p329 = scmp.eq.s32.totalorder %s25, 0
    %p330 = por %p328, %p329
    %p331 = scmp.le.s32.totalorder 1, %s19
    %p332 = scmp.lt.s32.totalorder %s19, 3
    %p333 = pnand %p331, %p332
    %p334 = pneg %p333
    // Predicated region
    $region9: #{db_forward.1} parent=5 // pred_check
      _
    $region10: #{db_forward.1} parent=5 // pred_check_branch
      %336 = sbr.rel (%p333) target = $region12
    $region11: #{db_forward.1} parent=5 // pred_region
      %s337 = ssub.s32 %s19, 1
      // Predicated region
      $region13: #{db_forward.1} parent=11 // pred_check
        %p338 = pneg %p66
      $region14: #{db_forward.1} parent=11 // pred_check_branch
        %340 = sbr.rel (%p338) target = $region16
      $region15: #{db_forward.1} parent=11 // pred_region
        _
      $region16: #{db_forward.1} parent=11 // pred_fallthru
        _
      // Predicated region
      $region17: #{db_forward.1} parent=11 // pred_check
        %p341 = pneg %p87
      $region18: #{db_forward.1} parent=11 // pred_check_branch
        %343 = sbr.rel (%p341) target = $region20
      $region19: #{db_forward.1} parent=11 // pred_region
        _
      $region20: #{db_forward.1} parent=11 // pred_fallthru
        _
      // Predicated region
      $region21: #{db_forward.1} parent=11 // pred_check
        %p344 = pneg %p108
      $region22: #{db_forward.1} parent=11 // pred_check_branch
        %346 = sbr.rel (%p344) target = $region24
      $region23: #{db_forward.1} parent=11 // pred_region
        _
      $region24: #{db_forward.1} parent=11 // pred_fallthru
        _
      // Predicated region
      $region25: #{db_forward.1} parent=11 // pred_check
        %p347 = pneg %p129
      $region26: #{db_forward.1} parent=11 // pred_check_branch
        %349 = sbr.rel (%p347) target = $region28
      $region27: #{db_forward.1} parent=11 // pred_region
        _
      $region28: #{db_forward.1} parent=11 // pred_fallthru
        _
      // Predicated region
      $region29: #{db_forward.1} parent=11 // pred_check
        %p350 = pneg %p150
      $region30: #{db_forward.1} parent=11 // pred_check_branch
        %352 = sbr.rel (%p350) target = $region32
      $region31: #{db_forward.1} parent=11 // pred_region
        _
      $region32: #{db_forward.1} parent=11 // pred_fallthru
        _
      // Predicated region
      $region33: #{db_forward.1} parent=11 // pred_check
        %p353 = pneg %p171
      $region34: #{db_forward.1} parent=11 // pred_check_branch
        %355 = sbr.rel (%p353) target = $region36
      $region35: #{db_forward.1} parent=11 // pred_region
        _
      $region36: #{db_forward.1} parent=11 // pred_fallthru
        _
      // Predicated region
      $region37: #{db_forward.1} parent=11 // pred_check
        %p356 = pneg %p192
      $region38: #{db_forward.1} parent=11 // pred_check_branch
        %358 = sbr.rel (%p356) target = $region40
      $region39: #{db_forward.1} parent=11 // pred_region
        _
      $region40: #{db_forward.1} parent=11 // pred_fallthru
        _
      // Predicated region
      $region41: #{db_forward.1} parent=11 // pred_check
        %p359 = pneg %p213
      $region42: #{db_forward.1} parent=11 // pred_check_branch
        %361 = sbr.rel (%p359) target = $region44
      $region43: #{db_forward.1} parent=11 // pred_region
        _
      $region44: #{db_forward.1} parent=11 // pred_fallthru
        _
      // Predicated region
      $region45: #{db_forward.1} parent=11 // pred_check
        %p362 = pneg %p234
      $region46: #{db_forward.1} parent=11 // pred_check_branch
        %364 = sbr.rel (%p362) target = $region48
      $region47: #{db_forward.1} parent=11 // pred_region
        _
      $region48: #{db_forward.1} parent=11 // pred_fallthru
        _
      // Predicated region
      $region49: #{db_forward.1} parent=11 // pred_check
        %p365 = pneg %p255
      $region50: #{db_forward.1} parent=11 // pred_check_branch
        %367 = sbr.rel (%p365) target = $region52
      $region51: #{db_forward.1} parent=11 // pred_region
        _
      $region52: #{db_forward.1} parent=11 // pred_fallthru
        _
      // Predicated region
      $region53: #{db_forward.1} parent=11 // pred_check
        %p368 = pneg %p276
      $region54: #{db_forward.1} parent=11 // pred_check_branch
        %370 = sbr.rel (%p368) target = $region56
      $region55: #{db_forward.1} parent=11 // pred_region
        _
      $region56: #{db_forward.1} parent=11 // pred_fallthru
        _
      // Predicated region
      $region57: #{db_forward.1} parent=11 // pred_check
        %p371 = pneg %p297
      $region58: #{db_forward.1} parent=11 // pred_check_branch
        %373 = sbr.rel (%p371) target = $region60
      $region59: #{db_forward.1} parent=11 // pred_region
        _
      $region60: #{db_forward.1} parent=11 // pred_fallthru
        _
    $region12: #{db_forward.1} parent=5 // pred_fallthru
      _
    %p374 = scmp.lt.s32.totalorder %s19, 2
    // Predicated region
    $region61: #{db_forward.1} parent=5 // pred_check
      %p375 = pneg %p374
    $region62: #{db_forward.1} parent=5 // pred_check_branch
      %377 = sbr.rel (%p375) target = $region64
    $region63: #{db_forward.1} parent=5 // pred_region
      // Predicated region
      $region65: #{db_forward.1} parent=63 // pred_check
        %p378 = pneg %p39
      $region66: #{db_forward.1} parent=63 // pred_check_branch
        %380 = sbr.rel (%p378) target = $region68
      $region67: #{db_forward.1} parent=63 // pred_region
        %p381 = scmp.lt.s32.totalorder %s19, 1
        %s382 = scalar_select %p381, %s19, 1
        %s383 = smul.addr %s382, 2
        %s384 = smul.addr %s383, 4
        %s385 = scalar_lea.vmem %s0, %s384
      $region68: #{db_forward.1} parent=63 // pred_fallthru
        _
    $region64: #{db_forward.1} parent=5 // pred_fallthru
      _
    %p386 = scmp.le.s32.totalorder 1, %s19
    %p387 = scmp.lt.s32.totalorder %s19, 3
    %p388 = pnand %p386, %p387
    %p389 = pneg %p388
    // Predicated region
    $region69: #{db_forward.1} parent=5 // pred_check
      _
    $region70: #{db_forward.1} parent=5 // pred_check_branch
      %391 = sbr.rel (%p388) target = $region72
    $region71: #{db_forward.1} parent=5 // pred_region
      %s392 = ssub.s32 %s19, 1
      %p393 = scmp.lt.s32.totalorder %s24, 1
      %s394 = scalar_select %p393, %s24, 1
      %s395 = smul.addr %s394, 2
      %s396 = smul.addr %s395, 4
      %s397 = scalar_lea.vmem %s0, %s396
      %p398 = pneg %p45
      %p399 = pneg %p42
      %p400 = pneg %p66
      %p401 = pneg %p63
      %p402 = pneg %p87
      %p403 = pneg %p84
      %p404 = pneg %p108
      %p405 = pneg %p105
      %p406 = pneg %p129
      %p407 = pneg %p126
      %p408 = pneg %p150
      %p409 = pneg %p147
      %p410 = pneg %p171
      %p411 = pneg %p168
      %p412 = pneg %p192
      %p413 = pneg %p189
      %p414 = pneg %p213
      %p415 = pneg %p210
      %p416 = pneg %p234
      %p417 = pneg %p231
      %p418 = pneg %p255
      %p419 = pneg %p252
      %p420 = pneg %p276
      %p421 = pneg %p273
      %p422 = pneg %p297
      %p423 = pneg %p294
      %p424 = pneg %p323
      %p425 = pneg %p320
      %p426 = scmp.lt.s32.totalorder %s24, 1
      %s427 = scalar_select %p426, %s24, 1
      %s428 = smul.addr %s427, 2
      %s429 = smul.addr %s428, 4
      %s430 = scalar_lea.vmem %s13, %s429
      %p431 = scmp.lt.s32.totalorder %s24, 1
      %s432 = scalar_select %p431, %s24, 1
      %s433 = smul.addr %s432, 2
      %s434 = smul.addr %s433, 4
      %s435 = scalar_lea.vmem %s0, %s434
      %p436 = scmp.lt.s32.totalorder %s24, 1
      %s437 = scalar_select %p436, %s24, 1
      %s438 = smul.addr %s437, 2
      %s439 = smul.addr %s438, 4
      %s440 = scalar_lea.vmem %s13, %s439
      %v441 = vld [vmem:[%s1] sm:$0x3]
      %s442 = scalar_lea.vmem %s1, 2
      %v443 = vld [vmem:[%s442] sm:$0x3]
      %s444 = scalar_lea.vmem %s1, 4
      %v445 = vld [vmem:[%s444] sm:$0x3]
      %s446 = scalar_lea.vmem %s1, 6
      %v447 = vld [vmem:[%s446] sm:$0x3]
      %s448 = scalar_lea.vmem %s1, 10
      %v449 = vld [vmem:[%s448] sm:$0x3]
      %s450 = scalar_lea.vmem %s1, 12
      %v451 = vld [vmem:[%s450] sm:$0x3]
      %s452 = scalar_lea.vmem %s1, 14
      %v453 = vld [vmem:[%s452] sm:$0x3]
      %s454 = scalar_lea.vmem %s1, 16
      %v455 = vld [vmem:[%s454] sm:$0x3]
      %v456 = vld [vmem:[%s435] sm:$0xff]
      %v458 = vcombine.high %v456, %v456
      %vm460 = vcmask 1043456
      %v461 = vsel %vm460, %v456, 0.0
      %v462 = vsel %vm460, %v458, 0.0
      %463 = vrot.lane.b32.xlu0 %v461, 17
      %v464 = vpop.permute.xlu0 %463
      %465 = vrot.lane.b32.xlu0 %v462, 17
      %v466 = vpop.permute.xlu0 %465
      %v467 = vlaneseq
      %v468 = vand.u32 %v467, 127
      %vm469 = vcmp.lt.s32.totalorder %v468, 17
      %v470 = vsel %vm469, %v464, %v466
      %v471 = vsel %vm469, %v466, %v464
      %v473 = vlaneseq
      %v474 = vshrl.u32 %v473, 7
      %v475 = vsub.s32 0, %v474
      %v476 = vrot.slane %v441, %v475
      %v477 = vlaneseq
      %v478 = vshrl.u32 %v477, 7
      %v479 = vsub.s32 1, %v478
      %v480 = vrot.slane %v441, %v479
      %v483 = vmul.f32 %v471, %v476
      %v484 = vmul.f32 %v470, %v480
      %485 = vst [vmem:[#allocation2] sm:$0xff] %v483
      %486 = vst [vmem:[#allocation2 + $0x8] sm:$0xff] %v484
      %487 = vrot.lane.b32.xlu0 %v461, 16
      %v488 = vpop.permute.xlu0 %487
      %489 = vrot.lane.b32.xlu0 %v462, 16
      %v490 = vpop.permute.xlu0 %489
      %vm491 = vcmp.lt.s32.totalorder %v468, 16
      %v492 = vsel %vm491, %v488, %v490
      %v493 = vsel %vm491, %v490, %v488
      %v495 = vlaneseq
      %v496 = vshrl.u32 %v495, 7
      %v497 = vsub.s32 0, %v496
      %v498 = vrot.slane %v443, %v497
      %v499 = vlaneseq
      %v500 = vshrl.u32 %v499, 7
      %v501 = vsub.s32 1, %v500
      %v502 = vrot.slane %v443, %v501
      %v505 = vmul.f32 %v493, %v498
      %v506 = vmul.f32 %v492, %v502
      %507 = vst [vmem:[#allocation2 + $0x10] sm:$0xff] %v505
      %508 = vst [vmem:[#allocation2 + $0x18] sm:$0xff] %v506
      %509 = vrot.lane.b32.xlu0 %v461, 15
      %v510 = vpop.permute.xlu0 %509
      %511 = vrot.lane.b32.xlu0 %v462, 15
      %v512 = vpop.permute.xlu0 %511
      %vm513 = vcmp.lt.s32.totalorder %v468, 15
      %v514 = vsel %vm513, %v510, %v512
      %v515 = vsel %vm513, %v512, %v510
      %v517 = vlaneseq
      %v518 = vshrl.u32 %v517, 7
      %v519 = vsub.s32 0, %v518
      %v520 = vrot.slane %v445, %v519
      %v521 = vlaneseq
      %v522 = vshrl.u32 %v521, 7
      %v523 = vsub.s32 1, %v522
      %v524 = vrot.slane %v445, %v523
      %v527 = vmul.f32 %v515, %v520
      %v528 = vmul.f32 %v514, %v524
      %529 = vst [vmem:[#allocation2 + $0x20] sm:$0xff] %v527
      %530 = vst [vmem:[#allocation2 + $0x28] sm:$0xff] %v528
      %531 = vrot.lane.b32.xlu0 %v461, 1
      %v532 = vpop.permute.xlu0 %531
      %533 = vrot.lane.b32.xlu0 %v462, 1
      %v534 = vpop.permute.xlu0 %533
      %vm535 = vcmp.lt.s32.totalorder %v468, 1
      %v536 = vsel %vm535, %v532, %v534
      %v537 = vsel %vm535, %v534, %v532
      %v539 = vlaneseq
      %v540 = vshrl.u32 %v539, 7
      %v541 = vsub.s32 0, %v540
      %v542 = vrot.slane %v447, %v541
      %v543 = vlaneseq
      %v544 = vshrl.u32 %v543, 7
      %v545 = vsub.s32 1, %v544
      %v546 = vrot.slane %v447, %v545
      %v549 = vmul.f32 %v537, %v542
      %v550 = vmul.f32 %v536, %v546
      %551 = vst [vmem:[#allocation2 + $0x30] sm:$0xff] %v549
      %552 = vst [vmem:[#allocation2 + $0x38] sm:$0xff] %v550
      %553 = vst [vmem:[#allocation2 + $0x40] sm:$0xff] %v461
      %554 = vst [vmem:[#allocation2 + $0x48] sm:$0xff] %v462
      %555 = vrot.lane.b32.xlu0 %v461, 127
      %v556 = vpop.permute.xlu0 %555
      %557 = vrot.lane.b32.xlu0 %v462, 127
      %v558 = vpop.permute.xlu0 %557
      %vm559 = vcmp.lt.s32.totalorder %v468, 127
      %v560 = vsel %vm559, %v556, %v558
      %v561 = vsel %vm559, %v558, %v556
      %v563 = vlaneseq
      %v564 = vshrl.u32 %v563, 7
      %v565 = vsub.s32 0, %v564
      %v566 = vrot.slane %v449, %v565
      %v567 = vlaneseq
      %v568 = vshrl.u32 %v567, 7
      %v569 = vsub.s32 1, %v568
      %v570 = vrot.slane %v449, %v569
      %v573 = vmul.f32 %v560, %v566
      %v574 = vmul.f32 %v561, %v570
      %575 = vst [vmem:[#allocation2 + $0x50] sm:$0xff] %v573
      %576 = vst [vmem:[#allocation2 + $0x58] sm:$0xff] %v574
      %577 = vrot.lane.b32.xlu0 %v461, 113
      %v578 = vpop.permute.xlu0 %577
      %579 = vrot.lane.b32.xlu0 %v462, 113
      %v580 = vpop.permute.xlu0 %579
      %vm581 = vcmp.lt.s32.totalorder %v468, 113
      %v582 = vsel %vm581, %v578, %v580
      %v583 = vsel %vm581, %v580, %v578
      %v585 = vlaneseq
      %v586 = vshrl.u32 %v585, 7
      %v587 = vsub.s32 0, %v586
      %v588 = vrot.slane %v451, %v587
      %v589 = vlaneseq
      %v590 = vshrl.u32 %v589, 7
      %v591 = vsub.s32 1, %v590
      %v592 = vrot.slane %v451, %v591
      %v595 = vmul.f32 %v582, %v588
      %v596 = vmul.f32 %v583, %v592
      %597 = vst [vmem:[#allocation2 + $0x60] sm:$0xff] %v595
      %598 = vst [vmem:[#allocation2 + $0x68] sm:$0xff] %v596
      %599 = vrot.lane.b32.xlu0 %v461, 112
      %v600 = vpop.permute.xlu0 %599
      %601 = vrot.lane.b32.xlu0 %v462, 112
      %v602 = vpop.permute.xlu0 %601
      %vm603 = vcmp.lt.s32.totalorder %v468, 112
      %v604 = vsel %vm603, %v600, %v602
      %v605 = vsel %vm603, %v602, %v600
      %v607 = vlaneseq
      %v608 = vshrl.u32 %v607, 7
      %v609 = vsub.s32 0, %v608
      %v610 = vrot.slane %v453, %v609
      %v611 = vlaneseq
      %v612 = vshrl.u32 %v611, 7
      %v613 = vsub.s32 1, %v612
      %v614 = vrot.slane %v453, %v613
      %v617 = vmul.f32 %v604, %v610
      %v618 = vmul.f32 %v605, %v614
      %619 = vst [vmem:[#allocation2 + $0x70] sm:$0xff] %v617
      %620 = vst [vmem:[#allocation2 + $0x78] sm:$0xff] %v618
      %621 = vrot.lane.b32.xlu0 %v461, 111
      %v622 = vpop.permute.xlu0 %621
      %623 = vrot.lane.b32.xlu0 %v462, 111
      %v624 = vpop.permute.xlu0 %623
      %vm625 = vcmp.lt.s32.totalorder %v468, 111
      %v626 = vsel %vm625, %v622, %v624
      %v627 = vsel %vm625, %v624, %v622
      %v629 = vlaneseq
      %v630 = vshrl.u32 %v629, 7
      %v631 = vsub.s32 0, %v630
      %v632 = vrot.slane %v455, %v631
      %v633 = vlaneseq
      %v634 = vshrl.u32 %v633, 7
      %v635 = vsub.s32 1, %v634
      %v636 = vrot.slane %v455, %v635
      %v639 = vmul.f32 %v626, %v632
      %v640 = vmul.f32 %v627, %v636
      %641 = vst [vmem:[#allocation2 + $0x80] sm:$0xff] %v639
      %642 = vst [vmem:[#allocation2 + $0x88] sm:$0xff] %v640
      %v643 = vld [vmem:[%s8] sm:$0xf]
      %v644 = vld [vmem:[%s12] sm:$0xf]
      %646 = vset.pattern.permute.xlu0 0
      %647 = vperm.xlu0 %646, %v644
      %v648 = vpop.permute.xlu0 %647
      %vm650 = vcmask 64512
      %v652 = vsel %vm650, %v643, 0
      %654 = vmatprep.subr.mxu0 0.0
      %655 = vmatpush1.msra.mxu0 0.0
      %656 = vmatprep.subr.mxu0 0.0
      %657 = vmatpush1.msra.mxu0 0.0
      %658 = vmatprep.subr.mxu0 0.0
      %659 = vmatpush1.msra.mxu0 0.0
      %660 = vmatprep.subr.mxu0 0.0
      %661 = vmatpush1.msra.mxu0 0.0
      %662 = vmatprep.subr.mxu0 0.0
      %663 = vmatpush1.msra.mxu0 0.0
      %664 = vmatprep.subr.mxu0 0.0
      %665 = vmatpush1.msra.mxu0 0.0
      %666 = vmatprep.subr.mxu0 0.0
      %667 = vmatpush1.msra.mxu0 0.0
      %668 = vmatprep.subr.mxu0 0.0
      %669 = vmatpush1.msra.mxu0 0.0
      %670 = vmatprep.subr.mxu0 0.0
      %671 = vmatpush1.msra.mxu0 0.0
      %672 = vmatprep.subr.mxu0 0.0
      %673 = vmatpush1.msra.mxu0 0.0
      %674 = vmatprep.subr.mxu0 0.0
      %675 = vmatpush1.msra.mxu0 0.0
      %676 = vmatprep.subr.mxu0 0.0
      %677 = vmatpush1.msra.mxu0 0.0
      %678 = vmatprep.subr.mxu0 0.0
      %679 = vmatpush1.msra.mxu0 0.0
      %680 = vmatprep.subr.mxu0 0.0
      %681 = vmatpush1.msra.mxu0 0.0
      %682 = vmatprep.subr.mxu0 0.0
      %683 = vmatpush1.msra.mxu0 0.0
      %684 = vmatprep.subr.mxu0 %v462
      %685 = vmatpush1.msra.mxu0 %v461
      %686 = vmatprep.subr.mxu0 0.0
      %687 = vmatpush2.msra.mxu0 0.0
      %688 = vmatprep.subr.mxu0 0.0
      %689 = vmatpush2.msra.mxu0 0.0
      %690 = vmatprep.subr.mxu0 0.0
      %691 = vmatpush2.msra.mxu0 0.0
      %692 = vmatprep.subr.mxu0 0.0
      %693 = vmatpush2.msra.mxu0 0.0
      %694 = vmatprep.subr.mxu0 0.0
      %695 = vmatpush2.msra.mxu0 0.0
      %696 = vmatprep.subr.mxu0 0.0
      %697 = vmatpush2.msra.mxu0 0.0
      %698 = vmatprep.subr.mxu0 0.0
      %699 = vmatpush2.msra.mxu0 0.0
      %700 = vmatprep.subr.mxu0 0.0
      %701 = vmatpush2.msra.mxu0 0.0
      %702 = vmatprep.subr.mxu0 0.0
      %703 = vmatpush2.msra.mxu0 0.0
      %704 = vmatprep.subr.mxu0 0.0
      %705 = vmatpush2.msra.mxu0 0.0
      %706 = vmatprep.subr.mxu0 0.0
      %707 = vmatpush2.msra.mxu0 0.0
      %708 = vmatprep.subr.mxu0 0.0
      %709 = vmatpush2.msra.mxu0 0.0
      %710 = vmatprep.subr.mxu0 0.0
      %711 = vmatpush2.msra.mxu0 0.0
      %712 = vmatprep.subr.mxu0 0.0
      %713 = vmatpush2.msra.mxu0 0.0
      %714 = vmatprep.subr.mxu0 0.0
      %715 = vmatpush2.msra.mxu0 0.0
      %716 = vmatprep.subr.mxu0 0.0
      %717 = vmatpush2.msra.mxu0 0.0
      %718 = vmatprep.mubr.f32.mxu0 0.0
      %719 = vmatmul.mubr.f32.gmra.mxu0 %v652
      %v720 = vpop.f32.mrf.mxu0
      %v721 = vadd.f32 %v648, %v720
      %v722 = vpop.f32.mrf.mxu0
      %v723 = vadd.f32 %v648, %v722
      %724 = vdwg.mxu0
      %v725 = vld [vmem:[%s2] sm:$0xff]
      %v726 = vld [vmem:[%s3] sm:$0xff]
      %v727 = vld [vmem:[#allocation2] sm:$0xff]
      %v728 = vld [vmem:[#allocation2 + $0x8] sm:$0xff]
      %v729 = vld [vmem:[#allocation2 + $0x10] sm:$0xff]
      %v730 = vld [vmem:[#allocation2 + $0x18] sm:$0xff]
      %v731 = vld [vmem:[#allocation2 + $0x20] sm:$0xff]
      %v732 = vld [vmem:[#allocation2 + $0x28] sm:$0xff]
      %v733 = vld [vmem:[#allocation2 + $0x30] sm:$0xff]
      %v734 = vld [vmem:[#allocation2 + $0x38] sm:$0xff]
      %v735 = vld [vmem:[#allocation2 + $0x40] sm:$0xff]
      %v736 = vld [vmem:[#allocation2 + $0x48] sm:$0xff]
      %v737 = vld [vmem:[#allocation2 + $0x50] sm:$0xff]
      %v738 = vld [vmem:[#allocation2 + $0x58] sm:$0xff]
      %v739 = vld [vmem:[#allocation2 + $0x60] sm:$0xff]
      %v740 = vld [vmem:[#allocation2 + $0x68] sm:$0xff]
      %v741 = vld [vmem:[#allocation2 + $0x70] sm:$0xff]
      %v742 = vld [vmem:[#allocation2 + $0x78] sm:$0xff]
      %v743 = vld [vmem:[#allocation2 + $0x80] sm:$0xff]
      %v744 = vld [vmem:[#allocation2 + $0x88] sm:$0xff]
      %746 = vset.pattern.permute.xlu0 0
      %747 = vperm.xlu0 %746, %v726
      %v748 = vpop.permute.xlu0 %747
      %vm750 = vcmask 588800
      %v752 = vsel %vm750, %v725, 0
      %754 = vmatprep.subr.mxu0 0.0
      %755 = vmatpush1.msra.mxu0 0.0
      %756 = vmatprep.subr.mxu0 0.0
      %757 = vmatpush1.msra.mxu0 0.0
      %758 = vmatprep.subr.mxu0 0.0
      %759 = vmatpush1.msra.mxu0 0.0
      %760 = vmatprep.subr.mxu0 0.0
      %761 = vmatpush1.msra.mxu0 0.0
      %762 = vmatprep.subr.mxu0 0.0
      %763 = vmatpush1.msra.mxu0 0.0
      %764 = vmatprep.subr.mxu0 0.0
      %765 = vmatpush1.msra.mxu0 0.0
      %766 = vmatprep.subr.mxu0 0.0
      %767 = vmatpush1.msra.mxu0 0.0
      %768 = vmatprep.subr.mxu0 %v744
      %769 = vmatpush1.msra.mxu0 %v743
      %770 = vmatprep.subr.mxu0 %v742
      %771 = vmatpush1.msra.mxu0 %v741
      %772 = vmatprep.subr.mxu0 %v740
      %773 = vmatpush1.msra.mxu0 %v739
      %774 = vmatprep.subr.mxu0 %v738
      %775 = vmatpush1.msra.mxu0 %v737
      %776 = vmatprep.subr.mxu0 %v736
      %777 = vmatpush1.msra.mxu0 %v735
      %778 = vmatprep.subr.mxu0 %v734
      %779 = vmatpush1.msra.mxu0 %v733
      %780 = vmatprep.subr.mxu0 %v732
      %781 = vmatpush1.msra.mxu0 %v731
      %782 = vmatprep.subr.mxu0 %v730
      %783 = vmatpush1.msra.mxu0 %v729
      %784 = vmatprep.subr.mxu0 %v728
      %785 = vmatpush1.msra.mxu0 %v727
      %786 = vmatprep.subr.mxu0 0.0
      %787 = vmatpush2.msra.mxu0 0.0
      %788 = vmatprep.subr.mxu0 0.0
      %789 = vmatpush2.msra.mxu0 0.0
      %790 = vmatprep.subr.mxu0 0.0
      %791 = vmatpush2.msra.mxu0 0.0
      %792 = vmatprep.subr.mxu0 0.0
      %793 = vmatpush2.msra.mxu0 0.0
      %794 = vmatprep.subr.mxu0 0.0
      %795 = vmatpush2.msra.mxu0 0.0
      %796 = vmatprep.subr.mxu0 0.0
      %797 = vmatpush2.msra.mxu0 0.0
      %798 = vmatprep.subr.mxu0 0.0
      %799 = vmatpush2.msra.mxu0 0.0
      %800 = vmatprep.subr.mxu0 0.0
      %801 = vmatpush2.msra.mxu0 0.0
      %802 = vmatprep.subr.mxu0 0.0
      %803 = vmatpush2.msra.mxu0 0.0
      %804 = vmatprep.subr.mxu0 0.0
      %805 = vmatpush2.msra.mxu0 0.0
      %806 = vmatprep.subr.mxu0 0.0
      %807 = vmatpush2.msra.mxu0 0.0
      %808 = vmatprep.subr.mxu0 0.0
      %809 = vmatpush2.msra.mxu0 0.0
      %810 = vmatprep.subr.mxu0 0.0
      %811 = vmatpush2.msra.mxu0 0.0
      %812 = vmatprep.subr.mxu0 0.0
      %813 = vmatpush2.msra.mxu0 0.0
      %814 = vmatprep.subr.mxu0 0.0
      %815 = vmatpush2.msra.mxu0 0.0
      %816 = vmatprep.subr.mxu0 0.0
      %817 = vmatpush2.msra.mxu0 0.0
      %818 = vmatprep.mubr.f32.mxu0 0.0
      %819 = vmatmul.mubr.f32.gmra.mxu0 %v752
      %v820 = vpop.f32.mrf.mxu0
      %v821 = vadd.f32 %v748, %v820
      %v822 = vpop.f32.mrf.mxu0
      %v823 = vadd.f32 %v748, %v822
      %824 = vdwg.mxu0
      %v825 = vmax.f32 %v821, 0.0
      %v826 = vmax.f32 %v823, 0.0
      %v827 = vld [vmem:[%s9] sm:$0xf]
      %v829 = vsel %vm650, %v827, 0
      %831 = vmatprep.subr.mxu0 0.0
      %832 = vmatpush1.msra.mxu0 0.0
      %833 = vmatprep.subr.mxu0 0.0
      %834 = vmatpush1.msra.mxu0 0.0
      %835 = vmatprep.subr.mxu0 0.0
      %836 = vmatpush1.msra.mxu0 0.0
      %837 = vmatprep.subr.mxu0 0.0
      %838 = vmatpush1.msra.mxu0 0.0
      %839 = vmatprep.subr.mxu0 0.0
      %840 = vmatpush1.msra.mxu0 0.0
      %841 = vmatprep.subr.mxu0 0.0
      %842 = vmatpush1.msra.mxu0 0.0
      %843 = vmatprep.subr.mxu0 0.0
      %844 = vmatpush1.msra.mxu0 0.0
      %845 = vmatprep.subr.mxu0 0.0
      %846 = vmatpush1.msra.mxu0 0.0
      %847 = vmatprep.subr.mxu0 0.0
      %848 = vmatpush1.msra.mxu0 0.0
      %849 = vmatprep.subr.mxu0 0.0
      %850 = vmatpush1.msra.mxu0 0.0
      %851 = vmatprep.subr.mxu0 0.0
      %852 = vmatpush1.msra.mxu0 0.0
      %853 = vmatprep.subr.mxu0 0.0
      %854 = vmatpush1.msra.mxu0 0.0
      %855 = vmatprep.subr.mxu0 0.0
      %856 = vmatpush1.msra.mxu0 0.0
      %857 = vmatprep.subr.mxu0 0.0
      %858 = vmatpush1.msra.mxu0 0.0
      %859 = vmatprep.subr.mxu0 0.0
      %860 = vmatpush1.msra.mxu0 0.0
      %861 = vmatprep.subr.mxu0 %v826
      %862 = vmatpush1.msra.mxu0 %v825
      %863 = vmatprep.subr.mxu0 0.0
      %864 = vmatpush2.msra.mxu0 0.0
      %865 = vmatprep.subr.mxu0 0.0
      %866 = vmatpush2.msra.mxu0 0.0
      %867 = vmatprep.subr.mxu0 0.0
      %868 = vmatpush2.msra.mxu0 0.0
      %869 = vmatprep.subr.mxu0 0.0
      %870 = vmatpush2.msra.mxu0 0.0
      %871 = vmatprep.subr.mxu0 0.0
      %872 = vmatpush2.msra.mxu0 0.0
      %873 = vmatprep.subr.mxu0 0.0
      %874 = vmatpush2.msra.mxu0 0.0
      %875 = vmatprep.subr.mxu0 0.0
      %876 = vmatpush2.msra.mxu0 0.0
      %877 = vmatprep.subr.mxu0 0.0
      %878 = vmatpush2.msra.mxu0 0.0
      %879 = vmatprep.subr.mxu0 0.0
      %880 = vmatpush2.msra.mxu0 0.0
      %881 = vmatprep.subr.mxu0 0.0
      %882 = vmatpush2.msra.mxu0 0.0
      %883 = vmatprep.subr.mxu0 0.0
      %884 = vmatpush2.msra.mxu0 0.0
      %885 = vmatprep.subr.mxu0 0.0
      %886 = vmatpush2.msra.mxu0 0.0
      %887 = vmatprep.subr.mxu0 0.0
      %888 = vmatpush2.msra.mxu0 0.0
      %889 = vmatprep.subr.mxu0 0.0
      %890 = vmatpush2.msra.mxu0 0.0
      %891 = vmatprep.subr.mxu0 0.0
      %892 = vmatpush2.msra.mxu0 0.0
      %893 = vmatprep.subr.mxu0 0.0
      %894 = vmatpush2.msra.mxu0 0.0
      %895 = vmatprep.mubr.f32.mxu0 0.0
      %896 = vmatmul.mubr.f32.gmra.mxu0 %v829
      %v897 = vpop.f32.mrf.mxu0
      %v898 = vadd.f32 0.0, %v897
      %v899 = vpop.f32.mrf.mxu0
      %v900 = vadd.f32 0.0, %v899
      %901 = vdwg.mxu0
      %v902 = vadd.f32 %v721, %v898
      %v903 = vadd.f32 %v723, %v900
      %904 = vrot.lane.b32.xlu0 %v825, 17
      %v905 = vpop.permute.xlu0 %904
      %906 = vrot.lane.b32.xlu0 %v826, 17
      %v907 = vpop.permute.xlu0 %906
      %v908 = vsel %vm469, %v905, %v907
      %v909 = vsel %vm469, %v907, %v905
      %v910 = vmul.f32 %v909, %v476
      %v911 = vmul.f32 %v908, %v480
      %912 = vst [vmem:[#allocation2 + $0x90] sm:$0xff] %v910
      %913 = vst [vmem:[#allocation2 + $0x98] sm:$0xff] %v911
      %914 = vrot.lane.b32.xlu0 %v825, 16
      %v915 = vpop.permute.xlu0 %914
      %916 = vrot.lane.b32.xlu0 %v826, 16
      %v917 = vpop.permute.xlu0 %916
      %v918 = vsel %vm491, %v915, %v917
      %v919 = vsel %vm491, %v917, %v915
      %v920 = vmul.f32 %v919, %v498
      %v921 = vmul.f32 %v918, %v502
      %922 = vst [vmem:[#allocation2 + $0xa0] sm:$0xff] %v920
      %923 = vst [vmem:[#allocation2 + $0xa8] sm:$0xff] %v921
      %924 = vrot.lane.b32.xlu0 %v825, 15
      %v925 = vpop.permute.xlu0 %924
      %926 = vrot.lane.b32.xlu0 %v826, 15
      %v927 = vpop.permute.xlu0 %926
      %v928 = vsel %vm513, %v925, %v927
      %v929 = vsel %vm513, %v927, %v925
      %v930 = vmul.f32 %v929, %v520
      %v931 = vmul.f32 %v928, %v524
      %932 = vst [vmem:[#allocation2 + $0xb0] sm:$0xff] %v930
      %933 = vst [vmem:[#allocation2 + $0xb8] sm:$0xff] %v931
      %934 = vrot.lane.b32.xlu0 %v825, 1
      %v935 = vpop.permute.xlu0 %934
      %936 = vrot.lane.b32.xlu0 %v826, 1
      %v937 = vpop.permute.xlu0 %936
      %v938 = vsel %vm535, %v935, %v937
      %v939 = vsel %vm535, %v937, %v935
      %v940 = vmul.f32 %v939, %v542
      %v941 = vmul.f32 %v938, %v546
      %942 = vst [vmem:[#allocation2 + $0xc0] sm:$0xff] %v940
      %943 = vst [vmem:[#allocation2 + $0xc8] sm:$0xff] %v941
      %944 = vst [vmem:[#allocation2 + $0xd0] sm:$0xff] %v825
      %945 = vst [vmem:[#allocation2 + $0xd8] sm:$0xff] %v826
      %946 = vrot.lane.b32.xlu0 %v825, 127
      %v947 = vpop.permute.xlu0 %946
      %948 = vrot.lane.b32.xlu0 %v826, 127
      %v949 = vpop.permute.xlu0 %948
      %v950 = vsel %vm559, %v947, %v949
      %v951 = vsel %vm559, %v949, %v947
      %v952 = vmul.f32 %v950, %v566
      %v953 = vmul.f32 %v951, %v570
      %954 = vst [vmem:[#allocation2 + $0xe0] sm:$0xff] %v952
      %955 = vst [vmem:[#allocation2 + $0xe8] sm:$0xff] %v953
      %956 = vrot.lane.b32.xlu0 %v825, 113
      %v957 = vpop.permute.xlu0 %956
      %958 = vrot.lane.b32.xlu0 %v826, 113
      %v959 = vpop.permute.xlu0 %958
      %v960 = vsel %vm581, %v957, %v959
      %v961 = vsel %vm581, %v959, %v957
      %v962 = vmul.f32 %v960, %v588
      %v963 = vmul.f32 %v961, %v592
      %964 = vst [vmem:[#allocation2 + $0xf0] sm:$0xff] %v962
      %965 = vst [vmem:[#allocation2 + $0xf8] sm:$0xff] %v963
      %966 = vrot.lane.b32.xlu0 %v825, 112
      %v967 = vpop.permute.xlu0 %966
      %968 = vrot.lane.b32.xlu0 %v826, 112
      %v969 = vpop.permute.xlu0 %968
      %v970 = vsel %vm603, %v967, %v969
      %v971 = vsel %vm603, %v969, %v967
      %v972 = vmul.f32 %v970, %v610
      %v973 = vmul.f32 %v971, %v614
      %974 = vst [vmem:[#allocation2 + $0x100] sm:$0xff] %v972
      %975 = vst [vmem:[#allocation2 + $0x108] sm:$0xff] %v973
      %976 = vrot.lane.b32.xlu0 %v825, 111
      %v977 = vpop.permute.xlu0 %976
      %978 = vrot.lane.b32.xlu0 %v826, 111
      %v979 = vpop.permute.xlu0 %978
      %v980 = vsel %vm625, %v977, %v979
      %v981 = vsel %vm625, %v979, %v977
      %v982 = vmul.f32 %v980, %v632
      %v983 = vmul.f32 %v981, %v636
      %984 = vst [vmem:[#allocation2 + $0x110] sm:$0xff] %v982
      %985 = vst [vmem:[#allocation2 + $0x118] sm:$0xff] %v983
      %v986 = vld [vmem:[%s4] sm:$0xff]
      %v987 = vld [vmem:[%s4 + $0x8] sm:$0xff]
      %v988 = vld [vmem:[%s5] sm:$0xff]
      %v989 = vld [vmem:[#allocation2] sm:$0xff]
      %v990 = vld [vmem:[#allocation2 + $0x8] sm:$0xff]
      %v991 = vld [vmem:[#allocation2 + $0x10] sm:$0xff]
      %v992 = vld [vmem:[#allocation2 + $0x18] sm:$0xff]
      %v993 = vld [vmem:[#allocation2 + $0x20] sm:$0xff]
      %v994 = vld [vmem:[#allocation2 + $0x28] sm:$0xff]
      %v995 = vld [vmem:[#allocation2 + $0x30] sm:$0xff]
      %v996 = vld [vmem:[#allocation2 + $0x38] sm:$0xff]
      %v997 = vld [vmem:[#allocation2 + $0x40] sm:$0xff]
      %v998 = vld [vmem:[#allocation2 + $0x48] sm:$0xff]
      %v999 = vld [vmem:[#allocation2 + $0x50] sm:$0xff]
      %v1000 = vld [vmem:[#allocation2 + $0x58] sm:$0xff]
      %v1001 = vld [vmem:[#allocation2 + $0x60] sm:$0xff]
      %v1002 = vld [vmem:[#allocation2 + $0x68] sm:$0xff]
      %v1003 = vld [vmem:[#allocation2 + $0x70] sm:$0xff]
      %v1004 = vld [vmem:[#allocation2 + $0x78] sm:$0xff]
      %v1005 = vld [vmem:[#allocation2 + $0x80] sm:$0xff]
      %v1006 = vld [vmem:[#allocation2 + $0x88] sm:$0xff]
      %v1007 = vld [vmem:[#allocation2 + $0x90] sm:$0xff]
      %v1008 = vld [vmem:[#allocation2 + $0x98] sm:$0xff]
      %v1009 = vld [vmem:[#allocation2 + $0xa0] sm:$0xff]
      %v1010 = vld [vmem:[#allocation2 + $0xa8] sm:$0xff]
      %v1011 = vld [vmem:[#allocation2 + $0xb0] sm:$0xff]
      %v1012 = vld [vmem:[#allocation2 + $0xb8] sm:$0xff]
      %v1013 = vld [vmem:[#allocation2 + $0xc0] sm:$0xff]
      %v1014 = vld [vmem:[#allocation2 + $0xc8] sm:$0xff]
      %v1015 = vld [vmem:[#allocation2 + $0xd0] sm:$0xff]
      %v1016 = vld [vmem:[#allocation2 + $0xd8] sm:$0xff]
      %v1017 = vld [vmem:[#allocation2 + $0xe0] sm:$0xff]
      %v1018 = vld [vmem:[#allocation2 + $0xe8] sm:$0xff]
      %v1019 = vld [vmem:[#allocation2 + $0xf0] sm:$0xff]
      %v1020 = vld [vmem:[#allocation2 + $0xf8] sm:$0xff]
      %v1021 = vld [vmem:[#allocation2 + $0x100] sm:$0xff]
      %v1022 = vld [vmem:[#allocation2 + $0x108] sm:$0xff]
      %v1023 = vld [vmem:[#allocation2 + $0x110] sm:$0xff]
      %v1024 = vld [vmem:[#allocation2 + $0x118] sm:$0xff]
      %1026 = vset.pattern.permute.xlu0 0
      %1027 = vperm.xlu0 %1026, %v988
      %v1028 = vpop.permute.xlu0 %1027
      %vm1030 = vcmask 130048
      %v1032 = vsel %vm1030, %v987, 0
      %1034 = vmatprep.subr.mxu0 %v1020
      %1035 = vmatpush1.msra.mxu0 %v1019
      %1036 = vmatprep.subr.mxu0 %v1018
      %1037 = vmatpush1.msra.mxu0 %v1017
      %1038 = vmatprep.subr.mxu0 %v1016
      %1039 = vmatpush1.msra.mxu0 %v1015
      %1040 = vmatprep.subr.mxu0 %v1014
      %1041 = vmatpush1.msra.mxu0 %v1013
      %1042 = vmatprep.subr.mxu0 %v1012
      %1043 = vmatpush1.msra.mxu0 %v1011
      %1044 = vmatprep.subr.mxu0 %v1010
      %1045 = vmatpush1.msra.mxu0 %v1009
      %1046 = vmatprep.subr.mxu0 %v1008
      %1047 = vmatpush1.msra.mxu0 %v1007
      %1048 = vmatprep.subr.mxu0 %v1006
      %1049 = vmatpush1.msra.mxu0 %v1005
      %1050 = vmatprep.subr.mxu0 %v1004
      %1051 = vmatpush1.msra.mxu0 %v1003
      %1052 = vmatprep.subr.mxu0 %v1002
      %1053 = vmatpush1.msra.mxu0 %v1001
      %1054 = vmatprep.subr.mxu0 %v1000
      %1055 = vmatpush1.msra.mxu0 %v999
      %1056 = vmatprep.subr.mxu0 %v998
      %1057 = vmatpush1.msra.mxu0 %v997
      %1058 = vmatprep.subr.mxu0 %v996
      %1059 = vmatpush1.msra.mxu0 %v995
      %1060 = vmatprep.subr.mxu0 %v994
      %1061 = vmatpush1.msra.mxu0 %v993
      %1062 = vmatprep.subr.mxu0 %v992
      %1063 = vmatpush1.msra.mxu0 %v991
      %1064 = vmatprep.subr.mxu0 %v990
      %1065 = vmatpush1.msra.mxu0 %v989
      %1066 = vmatprep.subr.mxu0 0.0
      %1067 = vmatpush2.msra.mxu0 0.0
      %1068 = vmatprep.subr.mxu0 0.0
      %1069 = vmatpush2.msra.mxu0 0.0
      %1070 = vmatprep.subr.mxu0 0.0
      %1071 = vmatpush2.msra.mxu0 0.0
      %1072 = vmatprep.subr.mxu0 0.0
      %1073 = vmatpush2.msra.mxu0 0.0
      %1074 = vmatprep.subr.mxu0 0.0
      %1075 = vmatpush2.msra.mxu0 0.0
      %1076 = vmatprep.subr.mxu0 0.0
      %1077 = vmatpush2.msra.mxu0 0.0
      %1078 = vmatprep.subr.mxu0 0.0
      %1079 = vmatpush2.msra.mxu0 0.0
      %1080 = vmatprep.subr.mxu0 0.0
      %1081 = vmatpush2.msra.mxu0 0.0
      %1082 = vmatprep.subr.mxu0 0.0
      %1083 = vmatpush2.msra.mxu0 0.0
      %1084 = vmatprep.subr.mxu0 0.0
      %1085 = vmatpush2.msra.mxu0 0.0
      %1086 = vmatprep.subr.mxu0 0.0
      %1087 = vmatpush2.msra.mxu0 0.0
      %1088 = vmatprep.subr.mxu0 0.0
      %1089 = vmatpush2.msra.mxu0 0.0
      %1090 = vmatprep.subr.mxu0 0.0
      %1091 = vmatpush2.msra.mxu0 0.0
      %1092 = vmatprep.subr.mxu0 0.0
      %1093 = vmatpush2.msra.mxu0 0.0
      %1094 = vmatprep.subr.mxu0 %v1024
      %1095 = vmatpush2.msra.mxu0 %v1023
      %1096 = vmatprep.subr.mxu0 %v1022
      %1097 = vmatpush2.msra.mxu0 %v1021
      %1098 = vmatprep.mubr.f32.mxu0 %v1032
      %1099 = vmatmul.mubr.f32.gmra.mxu0 %v986
      %v1100 = vpop.f32.mrf.mxu0
      %v1101 = vadd.f32 %v1028, %v1100
      %v1102 = vpop.f32.mrf.mxu0
      %v1103 = vadd.f32 %v1028, %v1102
      %1104 = vdwg.mxu0
      %v1105 = vmax.f32 %v1101, 0.0
      %v1106 = vmax.f32 %v1103, 0.0
      %v1107 = vld [vmem:[%s10] sm:$0xf]
      %v1109 = vsel %vm650, %v1107, 0
      %1111 = vmatprep.subr.mxu0 0.0
      %1112 = vmatpush1.msra.mxu0 0.0
      %1113 = vmatprep.subr.mxu0 0.0
      %1114 = vmatpush1.msra.mxu0 0.0
      %1115 = vmatprep.subr.mxu0 0.0
      %1116 = vmatpush1.msra.mxu0 0.0
      %1117 = vmatprep.subr.mxu0 0.0
      %1118 = vmatpush1.msra.mxu0 0.0
      %1119 = vmatprep.subr.mxu0 0.0
      %1120 = vmatpush1.msra.mxu0 0.0
      %1121 = vmatprep.subr.mxu0 0.0
      %1122 = vmatpush1.msra.mxu0 0.0
      %1123 = vmatprep.subr.mxu0 0.0
      %1124 = vmatpush1.msra.mxu0 0.0
      %1125 = vmatprep.subr.mxu0 0.0
      %1126 = vmatpush1.msra.mxu0 0.0
      %1127 = vmatprep.subr.mxu0 0.0
      %1128 = vmatpush1.msra.mxu0 0.0
      %1129 = vmatprep.subr.mxu0 0.0
      %1130 = vmatpush1.msra.mxu0 0.0
      %1131 = vmatprep.subr.mxu0 0.0
      %1132 = vmatpush1.msra.mxu0 0.0
      %1133 = vmatprep.subr.mxu0 0.0
      %1134 = vmatpush1.msra.mxu0 0.0
      %1135 = vmatprep.subr.mxu0 0.0
      %1136 = vmatpush1.msra.mxu0 0.0
      %1137 = vmatprep.subr.mxu0 0.0
      %1138 = vmatpush1.msra.mxu0 0.0
      %1139 = vmatprep.subr.mxu0 0.0
      %1140 = vmatpush1.msra.mxu0 0.0
      %1141 = vmatprep.subr.mxu0 %v1106
      %1142 = vmatpush1.msra.mxu0 %v1105
      %1143 = vmatprep.subr.mxu0 0.0
      %1144 = vmatpush2.msra.mxu0 0.0
      %1145 = vmatprep.subr.mxu0 0.0
      %1146 = vmatpush2.msra.mxu0 0.0
      %1147 = vmatprep.subr.mxu0 0.0
      %1148 = vmatpush2.msra.mxu0 0.0
      %1149 = vmatprep.subr.mxu0 0.0
      %1150 = vmatpush2.msra.mxu0 0.0
      %1151 = vmatprep.subr.mxu0 0.0
      %1152 = vmatpush2.msra.mxu0 0.0
      %1153 = vmatprep.subr.mxu0 0.0
      %1154 = vmatpush2.msra.mxu0 0.0
      %1155 = vmatprep.subr.mxu0 0.0
      %1156 = vmatpush2.msra.mxu0 0.0
      %1157 = vmatprep.subr.mxu0 0.0
      %1158 = vmatpush2.msra.mxu0 0.0
      %1159 = vmatprep.subr.mxu0 0.0
      %1160 = vmatpush2.msra.mxu0 0.0
      %1161 = vmatprep.subr.mxu0 0.0
      %1162 = vmatpush2.msra.mxu0 0.0
      %1163 = vmatprep.subr.mxu0 0.0
      %1164 = vmatpush2.msra.mxu0 0.0
      %1165 = vmatprep.subr.mxu0 0.0
      %1166 = vmatpush2.msra.mxu0 0.0
      %1167 = vmatprep.subr.mxu0 0.0
      %1168 = vmatpush2.msra.mxu0 0.0
      %1169 = vmatprep.subr.mxu0 0.0
      %1170 = vmatpush2.msra.mxu0 0.0
      %1171 = vmatprep.subr.mxu0 0.0
      %1172 = vmatpush2.msra.mxu0 0.0
      %1173 = vmatprep.subr.mxu0 0.0
      %1174 = vmatpush2.msra.mxu0 0.0
      %1175 = vmatprep.mubr.f32.mxu0 0.0
      %1176 = vmatmul.mubr.f32.gmra.mxu0 %v1109
      %v1177 = vpop.f32.mrf.mxu0
      %v1178 = vadd.f32 0.0, %v1177
      %v1179 = vpop.f32.mrf.mxu0
      %v1180 = vadd.f32 0.0, %v1179
      %1181 = vdwg.mxu0
      %v1182 = vadd.f32 %v902, %v1178
      %v1183 = vadd.f32 %v903, %v1180
      %1184 = vrot.lane.b32.xlu0 %v1105, 17
      %v1185 = vpop.permute.xlu0 %1184
      %1186 = vrot.lane.b32.xlu0 %v1106, 17
      %v1187 = vpop.permute.xlu0 %1186
      %v1188 = vsel %vm469, %v1185, %v1187
      %v1189 = vsel %vm469, %v1187, %v1185
      %v1190 = vmul.f32 %v1189, %v476
      %v1191 = vmul.f32 %v1188, %v480
      %1192 = vst [vmem:[#allocation2 + $0x120] sm:$0xff] %v1190
      %1193 = vst [vmem:[#allocation2 + $0x128] sm:$0xff] %v1191
      %1194 = vrot.lane.b32.xlu0 %v1105, 16
      %v1195 = vpop.permute.xlu0 %1194
      %1196 = vrot.lane.b32.xlu0 %v1106, 16
      %v1197 = vpop.permute.xlu0 %1196
      %v1198 = vsel %vm491, %v1195, %v1197
      %v1199 = vsel %vm491, %v1197, %v1195
      %v1200 = vmul.f32 %v1199, %v498
      %v1201 = vmul.f32 %v1198, %v502
      %1202 = vst [vmem:[#allocation2 + $0x130] sm:$0xff] %v1200
      %1203 = vst [vmem:[#allocation2 + $0x138] sm:$0xff] %v1201
      %1204 = vrot.lane.b32.xlu0 %v1105, 15
      %v1205 = vpop.permute.xlu0 %1204
      %1206 = vrot.lane.b32.xlu0 %v1106, 15
      %v1207 = vpop.permute.xlu0 %1206
      %v1208 = vsel %vm513, %v1205, %v1207
      %v1209 = vsel %vm513, %v1207, %v1205
      %v1210 = vmul.f32 %v1209, %v520
      %v1211 = vmul.f32 %v1208, %v524
      %1212 = vst [vmem:[#allocation2 + $0x140] sm:$0xff] %v1210
      %1213 = vst [vmem:[#allocation2 + $0x148] sm:$0xff] %v1211
      %1214 = vrot.lane.b32.xlu0 %v1105, 1
      %v1215 = vpop.permute.xlu0 %1214
      %1216 = vrot.lane.b32.xlu0 %v1106, 1
      %v1217 = vpop.permute.xlu0 %1216
      %v1218 = vsel %vm535, %v1215, %v1217
      %v1219 = vsel %vm535, %v1217, %v1215
      %v1220 = vmul.f32 %v1219, %v542
      %v1221 = vmul.f32 %v1218, %v546
      %1222 = vst [vmem:[#allocation2 + $0x150] sm:$0xff] %v1220
      %1223 = vst [vmem:[#allocation2 + $0x158] sm:$0xff] %v1221
      %1224 = vst [vmem:[#allocation2 + $0x160] sm:$0xff] %v1105
      %1225 = vst [vmem:[#allocation2 + $0x168] sm:$0xff] %v1106
      %1226 = vrot.lane.b32.xlu0 %v1105, 127
      %v1227 = vpop.permute.xlu0 %1226
      %1228 = vrot.lane.b32.xlu0 %v1106, 127
      %v1229 = vpop.permute.xlu0 %1228
      %v1230 = vsel %vm559, %v1227, %v1229
      %v1231 = vsel %vm559, %v1229, %v1227
      %v1232 = vmul.f32 %v1230, %v566
      %v1233 = vmul.f32 %v1231, %v570
      %1234 = vst [vmem:[#allocation2 + $0x170] sm:$0xff] %v1232
      %1235 = vst [vmem:[#allocation2 + $0x178] sm:$0xff] %v1233
      %1236 = vrot.lane.b32.xlu0 %v1105, 113
      %v1237 = vpop.permute.xlu0 %1236
      %1238 = vrot.lane.b32.xlu0 %v1106, 113
      %v1239 = vpop.permute.xlu0 %1238
      %v1240 = vsel %vm581, %v1237, %v1239
      %v1241 = vsel %vm581, %v1239, %v1237
      %v1242 = vmul.f32 %v1240, %v588
      %v1243 = vmul.f32 %v1241, %v592
      %1244 = vst [vmem:[#allocation2 + $0x180] sm:$0xff] %v1242
      %1245 = vst [vmem:[#allocation2 + $0x188] sm:$0xff] %v1243
      %1246 = vrot.lane.b32.xlu0 %v1105, 112
      %v1247 = vpop.permute.xlu0 %1246
      %1248 = vrot.lane.b32.xlu0 %v1106, 112
      %v1249 = vpop.permute.xlu0 %1248
      %v1250 = vsel %vm603, %v1247, %v1249
      %v1251 = vsel %vm603, %v1249, %v1247
      %v1252 = vmul.f32 %v1250, %v610
      %v1253 = vmul.f32 %v1251, %v614
      %1254 = vst [vmem:[#allocation2 + $0x190] sm:$0xff] %v1252
      %1255 = vst [vmem:[#allocation2 + $0x198] sm:$0xff] %v1253
      %1256 = vrot.lane.b32.xlu0 %v1105, 111
      %v1257 = vpop.permute.xlu0 %1256
      %1258 = vrot.lane.b32.xlu0 %v1106, 111
      %v1259 = vpop.permute.xlu0 %1258
      %v1260 = vsel %vm625, %v1257, %v1259
      %v1261 = vsel %vm625, %v1259, %v1257
      %v1262 = vmul.f32 %v1260, %v632
      %v1263 = vmul.f32 %v1261, %v636
      %1264 = vst [vmem:[#allocation2 + $0x1a0] sm:$0xff] %v1262
      %1265 = vst [vmem:[#allocation2 + $0x1a8] sm:$0xff] %v1263
      %v1266 = vld [vmem:[%s6] sm:$0xff]
      %v1267 = vld [vmem:[%s6 + $0x8] sm:$0xff]
      %v1268 = vld [vmem:[%s7] sm:$0xff]
      %v1269 = vld [vmem:[#allocation2] sm:$0xff]
      %v1270 = vld [vmem:[#allocation2 + $0x8] sm:$0xff]
      %v1271 = vld [vmem:[#allocation2 + $0x10] sm:$0xff]
      %v1272 = vld [vmem:[#allocation2 + $0x18] sm:$0xff]
      %v1273 = vld [vmem:[#allocation2 + $0x20] sm:$0xff]
      %v1274 = vld [vmem:[#allocation2 + $0x28] sm:$0xff]
      %v1275 = vld [vmem:[#allocation2 + $0x30] sm:$0xff]
      %v1276 = vld [vmem:[#allocation2 + $0x38] sm:$0xff]
      %v1277 = vld [vmem:[#allocation2 + $0x40] sm:$0xff]
      %v1278 = vld [vmem:[#allocation2 + $0x48] sm:$0xff]
      %v1279 = vld [vmem:[#allocation2 + $0x50] sm:$0xff]
      %v1280 = vld [vmem:[#allocation2 + $0x58] sm:$0xff]
      %v1281 = vld [vmem:[#allocation2 + $0x60] sm:$0xff]
      %v1282 = vld [vmem:[#allocation2 + $0x68] sm:$0xff]
      %v1283 = vld [vmem:[#allocation2 + $0x70] sm:$0xff]
      %v1284 = vld [vmem:[#allocation2 + $0x78] sm:$0xff]
      %v1285 = vld [vmem:[#allocation2 + $0x80] sm:$0xff]
      %v1286 = vld [vmem:[#allocation2 + $0x88] sm:$0xff]
      %v1287 = vld [vmem:[#allocation2 + $0x90] sm:$0xff]
      %v1288 = vld [vmem:[#allocation2 + $0x98] sm:$0xff]
      %v1289 = vld [vmem:[#allocation2 + $0xa0] sm:$0xff]
      %v1290 = vld [vmem:[#allocation2 + $0xa8] sm:$0xff]
      %v1291 = vld [vmem:[#allocation2 + $0xb0] sm:$0xff]
      %v1292 = vld [vmem:[#allocation2 + $0xb8] sm:$0xff]
      %v1293 = vld [vmem:[#allocation2 + $0xc0] sm:$0xff]
      %v1294 = vld [vmem:[#allocation2 + $0xc8] sm:$0xff]
      %v1295 = vld [vmem:[#allocation2 + $0xd0] sm:$0xff]
      %v1296 = vld [vmem:[#allocation2 + $0xd8] sm:$0xff]
      %v1297 = vld [vmem:[#allocation2 + $0xe0] sm:$0xff]
      %v1298 = vld [vmem:[#allocation2 + $0xe8] sm:$0xff]
      %v1299 = vld [vmem:[#allocation2 + $0xf0] sm:$0xff]
      %v1300 = vld [vmem:[#allocation2 + $0xf8] sm:$0xff]
      %v1301 = vld [vmem:[#allocation2 + $0x100] sm:$0xff]
      %v1302 = vld [vmem:[#allocation2 + $0x108] sm:$0xff]
      %v1303 = vld [vmem:[#allocation2 + $0x110] sm:$0xff]
      %v1304 = vld [vmem:[#allocation2 + $0x118] sm:$0xff]
      %v1305 = vld [vmem:[#allocation2 + $0x120] sm:$0xff]
      %v1306 = vld [vmem:[#allocation2 + $0x128] sm:$0xff]
      %v1307 = vld [vmem:[#allocation2 + $0x130] sm:$0xff]
      %v1308 = vld [vmem:[#allocation2 + $0x138] sm:$0xff]
      %v1309 = vld [vmem:[#allocation2 + $0x140] sm:$0xff]
      %v1310 = vld [vmem:[#allocation2 + $0x148] sm:$0xff]
      %v1311 = vld [vmem:[#allocation2 + $0x150] sm:$0xff]
      %v1312 = vld [vmem:[#allocation2 + $0x158] sm:$0xff]
      %v1313 = vld [vmem:[#allocation2 + $0x160] sm:$0xff]
      %v1314 = vld [vmem:[#allocation2 + $0x168] sm:$0xff]
      %v1315 = vld [vmem:[#allocation2 + $0x170] sm:$0xff]
      %v1316 = vld [vmem:[#allocation2 + $0x178] sm:$0xff]
      %v1317 = vld [vmem:[#allocation2 + $0x180] sm:$0xff]
      %v1318 = vld [vmem:[#allocation2 + $0x188] sm:$0xff]
      %v1319 = vld [vmem:[#allocation2 + $0x190] sm:$0xff]
      %v1320 = vld [vmem:[#allocation2 + $0x198] sm:$0xff]
      %v1321 = vld [vmem:[#allocation2 + $0x1a0] sm:$0xff]
      %v1322 = vld [vmem:[#allocation2 + $0x1a8] sm:$0xff]
      %1324 = vset.pattern.permute.xlu0 0
      %1325 = vperm.xlu0 %1324, %v1268
      %v1326 = vpop.permute.xlu0 %1325
      %vm1328 = vcmask 719872
      %v1330 = vsel %vm1328, %v1267, 0
      %1332 = vmatprep.subr.mxu0 %v1300
      %1333 = vmatpush1.msra.mxu0 %v1299
      %1334 = vmatprep.subr.mxu0 %v1298
      %1335 = vmatpush1.msra.mxu0 %v1297
      %1336 = vmatprep.subr.mxu0 %v1296
      %1337 = vmatpush1.msra.mxu0 %v1295
      %1338 = vmatprep.subr.mxu0 %v1294
      %1339 = vmatpush1.msra.mxu0 %v1293
      %1340 = vmatprep.subr.mxu0 %v1292
      %1341 = vmatpush1.msra.mxu0 %v1291
      %1342 = vmatprep.subr.mxu0 %v1290
      %1343 = vmatpush1.msra.mxu0 %v1289
      %1344 = vmatprep.subr.mxu0 %v1288
      %1345 = vmatpush1.msra.mxu0 %v1287
      %1346 = vmatprep.subr.mxu0 %v1286
      %1347 = vmatpush1.msra.mxu0 %v1285
      %1348 = vmatprep.subr.mxu0 %v1284
      %1349 = vmatpush1.msra.mxu0 %v1283
      %1350 = vmatprep.subr.mxu0 %v1282
      %1351 = vmatpush1.msra.mxu0 %v1281
      %1352 = vmatprep.subr.mxu0 %v1280
      %1353 = vmatpush1.msra.mxu0 %v1279
      %1354 = vmatprep.subr.mxu0 %v1278
      %1355 = vmatpush1.msra.mxu0 %v1277
      %1356 = vmatprep.subr.mxu0 %v1276
      %1357 = vmatpush1.msra.mxu0 %v1275
      %1358 = vmatprep.subr.mxu0 %v1274
      %1359 = vmatpush1.msra.mxu0 %v1273
      %1360 = vmatprep.subr.mxu0 %v1272
      %1361 = vmatpush1.msra.mxu0 %v1271
      %1362 = vmatprep.subr.mxu0 %v1270
      %1363 = vmatpush1.msra.mxu0 %v1269
      %1364 = vmatprep.subr.mxu0 0.0
      %1365 = vmatpush2.msra.mxu0 0.0
      %1366 = vmatprep.subr.mxu0 0.0
      %1367 = vmatpush2.msra.mxu0 0.0
      %1368 = vmatprep.subr.mxu0 0.0
      %1369 = vmatpush2.msra.mxu0 0.0
      %1370 = vmatprep.subr.mxu0 0.0
      %1371 = vmatpush2.msra.mxu0 0.0
      %1372 = vmatprep.subr.mxu0 0.0
      %1373 = vmatpush2.msra.mxu0 0.0
      %1374 = vmatprep.subr.mxu0 %v1322
      %1375 = vmatpush2.msra.mxu0 %v1321
      %1376 = vmatprep.subr.mxu0 %v1320
      %1377 = vmatpush2.msra.mxu0 %v1319
      %1378 = vmatprep.subr.mxu0 %v1318
      %1379 = vmatpush2.msra.mxu0 %v1317
      %1380 = vmatprep.subr.mxu0 %v1316
      %1381 = vmatpush2.msra.mxu0 %v1315
      %1382 = vmatprep.subr.mxu0 %v1314
      %1383 = vmatpush2.msra.mxu0 %v1313
      %1384 = vmatprep.subr.mxu0 %v1312
      %1385 = vmatpush2.msra.mxu0 %v1311
      %1386 = vmatprep.subr.mxu0 %v1310
      %1387 = vmatpush2.msra.mxu0 %v1309
      %1388 = vmatprep.subr.mxu0 %v1308
      %1389 = vmatpush2.msra.mxu0 %v1307
      %1390 = vmatprep.subr.mxu0 %v1306
      %1391 = vmatpush2.msra.mxu0 %v1305
      %1392 = vmatprep.subr.mxu0 %v1304
      %1393 = vmatpush2.msra.mxu0 %v1303
      %1394 = vmatprep.subr.mxu0 %v1302
      %1395 = vmatpush2.msra.mxu0 %v1301
      %1396 = vmatprep.mubr.f32.mxu0 %v1330
      %1397 = vmatmul.mubr.f32.gmra.mxu0 %v1266
      %v1398 = vpop.f32.mrf.mxu0
      %v1399 = vadd.f32 %v1326, %v1398
      %v1400 = vpop.f32.mrf.mxu0
      %v1401 = vadd.f32 %v1326, %v1400
      %1402 = vdwg.mxu0
      %v1403 = vmax.f32 %v1399, 0.0
      %v1404 = vmax.f32 %v1401, 0.0
      %v1405 = vld [vmem:[%s11] sm:$0xf]
      %v1407 = vsel %vm650, %v1405, 0
      %1409 = vmatprep.subr.mxu0 0.0
      %1410 = vmatpush1.msra.mxu0 0.0
      %1411 = vmatprep.subr.mxu0 0.0
      %1412 = vmatpush1.msra.mxu0 0.0
      %1413 = vmatprep.subr.mxu0 0.0
      %1414 = vmatpush1.msra.mxu0 0.0
      %1415 = vmatprep.subr.mxu0 0.0
      %1416 = vmatpush1.msra.mxu0 0.0
      %1417 = vmatprep.subr.mxu0 0.0
      %1418 = vmatpush1.msra.mxu0 0.0
      %1419 = vmatprep.subr.mxu0 0.0
      %1420 = vmatpush1.msra.mxu0 0.0
      %1421 = vmatprep.subr.mxu0 0.0
      %1422 = vmatpush1.msra.mxu0 0.0
      %1423 = vmatprep.subr.mxu0 0.0
      %1424 = vmatpush1.msra.mxu0 0.0
      %1425 = vmatprep.subr.mxu0 0.0
      %1426 = vmatpush1.msra.mxu0 0.0
      %1427 = vmatprep.subr.mxu0 0.0
      %1428 = vmatpush1.msra.mxu0 0.0
      %1429 = vmatprep.subr.mxu0 0.0
      %1430 = vmatpush1.msra.mxu0 0.0
      %1431 = vmatprep.subr.mxu0 0.0
      %1432 = vmatpush1.msra.mxu0 0.0
      %1433 = vmatprep.subr.mxu0 0.0
      %1434 = vmatpush1.msra.mxu0 0.0
      %1435 = vmatprep.subr.mxu0 0.0
      %1436 = vmatpush1.msra.mxu0 0.0
      %1437 = vmatprep.subr.mxu0 0.0
      %1438 = vmatpush1.msra.mxu0 0.0
      %1439 = vmatprep.subr.mxu0 %v1404
      %1440 = vmatpush1.msra.mxu0 %v1403
      %1441 = vmatprep.subr.mxu0 0.0
      %1442 = vmatpush2.msra.mxu0 0.0
      %1443 = vmatprep.subr.mxu0 0.0
      %1444 = vmatpush2.msra.mxu0 0.0
      %1445 = vmatprep.subr.mxu0 0.0
      %1446 = vmatpush2.msra.mxu0 0.0
      %1447 = vmatprep.subr.mxu0 0.0
      %1448 = vmatpush2.msra.mxu0 0.0
      %1449 = vmatprep.subr.mxu0 0.0
      %1450 = vmatpush2.msra.mxu0 0.0
      %1451 = vmatprep.subr.mxu0 0.0
      %1452 = vmatpush2.msra.mxu0 0.0
      %1453 = vmatprep.subr.mxu0 0.0
      %1454 = vmatpush2.msra.mxu0 0.0
      %1455 = vmatprep.subr.mxu0 0.0
      %1456 = vmatpush2.msra.mxu0 0.0
      %1457 = vmatprep.subr.mxu0 0.0
      %1458 = vmatpush2.msra.mxu0 0.0
      %1459 = vmatprep.subr.mxu0 0.0
      %1460 = vmatpush2.msra.mxu0 0.0
      %1461 = vmatprep.subr.mxu0 0.0
      %1462 = vmatpush2.msra.mxu0 0.0
      %1463 = vmatprep.subr.mxu0 0.0
      %1464 = vmatpush2.msra.mxu0 0.0
      %1465 = vmatprep.subr.mxu0 0.0
      %1466 = vmatpush2.msra.mxu0 0.0
      %1467 = vmatprep.subr.mxu0 0.0
      %1468 = vmatpush2.msra.mxu0 0.0
      %1469 = vmatprep.subr.mxu0 0.0
      %1470 = vmatpush2.msra.mxu0 0.0
      %1471 = vmatprep.subr.mxu0 0.0
      %1472 = vmatpush2.msra.mxu0 0.0
      %1473 = vmatprep.mubr.f32.mxu0 0.0
      %1474 = vmatmul.mubr.f32.gmra.mxu0 %v1407
      %v1475 = vpop.f32.mrf.mxu0
      %v1476 = vadd.f32 0.0, %v1475
      %v1477 = vpop.f32.mrf.mxu0
      %v1478 = vadd.f32 0.0, %v1477
      %1479 = vdwg.mxu0
      %v1480 = vadd.f32 %v1182, %v1476
      %v1481 = vadd.f32 %v1183, %v1478
      %v1484 = vcombine.low %v1480, %v1481
      %1486 = vst [vmem:[%s440] sm:$0xff] %v1484
      %p1487 = scmp.lt.s32.totalorder %s24, 1
      %s1488 = scalar_select %p1487, %s24, 1
      %s1489 = smul.addr %s1488, 2
      %s1490 = smul.addr %s1489, 4
      %s1491 = scalar_lea.vmem %s13, %s1490
      // Predicated region
      $region73: #{db_forward.1} parent=71 // pred_check
        %p1492 = pneg %p320
      $region74: #{db_forward.1} parent=71 // pred_check_branch
        %1494 = sbr.rel (%p1492) target = $region76
      $region75: #{db_forward.1} parent=71 // pred_region
        _
      $region76: #{db_forward.1} parent=71 // pred_fallthru
        _
    $region72: #{db_forward.1} parent=5 // pred_fallthru
      _
    %p1495 = scmp.le.s32.totalorder 2, %s19
    // Predicated region
    $region77: #{db_forward.1} parent=5 // pred_check
      %p1496 = pneg %p1495
    $region78: #{db_forward.1} parent=5 // pred_check_branch
      %1498 = sbr.rel (%p1496) target = $region80
    $region79: #{db_forward.1} parent=5 // pred_region
      %s1499 = ssub.s32 %s19, 2
      // Predicated region
      $region81: #{db_forward.1} parent=79 // pred_check
        %p1500 = pneg %p326
      $region82: #{db_forward.1} parent=79 // pred_check_branch
        %1502 = sbr.rel (%p1500) target = $region84
      $region83: #{db_forward.1} parent=79 // pred_region
        %p1503 = scmp.lt.s32.totalorder %s25, 1
        %s1504 = scalar_select %p1503, %s25, 1
        %s1505 = smul.addr %s1504, 2
        %s1506 = smul.addr %s1505, 4
        %s1507 = scalar_lea.vmem %s13, %s1506
      $region84: #{db_forward.1} parent=79 // pred_fallthru
        _
    $region80: #{db_forward.1} parent=5 // pred_fallthru
      _
  $region6: #{db_forward.1} parent=0 // loop_footer
    %s23 = sadd.s32 1, %s19
  $region7: #{db_forward.1} parent=0 // loop_footer_branch
    %18 = sbr.rel target = $region3
  $region8: #{db_forward.1} parent=0 // loop_exit
    _

</llo_original>
